<compile_context>
chip_gen: v6e
topology: v6e:2x2x1
jax: 0.10.0
libtpu: 0.0.40
codegen_flags: <defaults>
</compile_context>

<pallas_src>
import functools

import jax
import jax.numpy as jnp
from jax.experimental import pallas as pl
from jax.experimental.pallas import tpu as pltpu


def _round_up(x, m):
    return ((x + m - 1) // m) * m


def cnn_kernel(x_ref, w_ref, b_ref, o_ref, *, L, L_pad, K):
    # x_ref: (b_tile, W_pad, E)  bf16  un-expanded input block (no im2col in HBM)
    # w_ref: (K, E, C_pad)       bf16  grid-invariant conv weights
    # b_ref: (1, C_pad)          f32   grid-invariant bias
    # o_ref: (b_tile, C_pad)     f32   lane-dense output block
    bt, _, E = x_ref.shape
    c_pad = o_ref.shape[-1]

    # In-kernel im2col as K accumulated MXU dots over the embedding dim.
    # K is a small static Python int -> fully unrolled at trace time.
    acc = jnp.zeros((bt * L_pad, c_pad), jnp.float32)
    for k in range(K):
        xs = x_ref[:, k:k + L_pad, :].reshape(bt * L_pad, E)        # shifted window
        acc = acc + jnp.dot(xs, w_ref[k], preferred_element_type=jnp.float32)

    # 8-aligned max over time.  Pad rows (t >= L) hold truncated-window conv
    # values, so mask them out before the max (bias + ReLU come afterwards).
    acc = acc.reshape(bt, L_pad, c_pad)
    if L_pad != L:
        t = jax.lax.broadcasted_iota(jnp.int32, (bt, L_pad, c_pad), 1)
        acc = jnp.where(t < L, acc, jnp.float32(-1e30))
    m = jnp.max(acc, axis=1)                                         # (b_tile, C_pad)

    # Bias + ReLU after the time max (bias is time-invariant, ReLU monotone):
    # O(C) elementwise work instead of O(C*L).
    o_ref[...] = jnp.maximum(m + b_ref[...], 0.0).astype(o_ref.dtype)


def cnn_forward(x, w, b, *, b_tile=256):
    """x: (B, E, W) f32, w: (C, E, K) f32, b: (C,) f32 -> (B, C) f32."""
    B, E, W = x.shape
    C, E2, K = w.shape
    assert E2 == E
    L = W - K + 1
    assert L >= 1, "m_word must be >= kernel_size"

    # Batch tile: whole (small) batch as one grid step, else a multiple of 8.
    if B <= b_tile:
        bt = B
    else:
        bt = max(8, (b_tile // 8) * 8)
    B_pad = _round_up(B, bt)

    L_pad = _round_up(L, 8)                  # 8-aligned sublane reduction over time
    W_pad = _round_up(L_pad + K - 1, 8)      # room for the K shifted L_pad windows
    # Lane-dense output stores; 128 fits the v5e MXU exactly.  On v6e/v7x switch to
    # 256 alignment when real C > 128 to fill the 2x256-wide MXU columns.
    C_pad = _round_up(C, 128)

    # Layout plumbing only (no K-fold im2col expansion): (B,E,W) -> (B_pad,W_pad,E)
    # + bf16 cast (the f32 accumulate stays inside the kernel).
    x3 = jnp.transpose(x, (0, 2, 1))
    x3 = jnp.pad(x3, ((0, B_pad - B), (0, W_pad - W), (0, 0))).astype(jnp.bfloat16)

    # (C,E,K) -> (K,E,C_pad): each tap k is a resident (E, C_pad) matmul operand.
    w2 = jnp.pad(jnp.transpose(w, (2, 1, 0)),
                 ((0, 0), (0, 0), (0, C_pad - C))).astype(jnp.bfloat16)
    b2 = jnp.pad(b.astype(jnp.float32).reshape(1, C), ((0, 0), (0, C_pad - C)))

    n_steps = B_pad // bt
    kernel = functools.partial(cnn_kernel, L=L, L_pad=L_pad, K=K)

    def build(invariant_kwargs):
        return pl.pallas_call(
            kernel,
            out_shape=jax.ShapeDtypeStruct((B_pad, C_pad), jnp.float32),
            grid_spec=pltpu.PrefetchScalarGridSpec(
                num_scalar_prefetch=0,
                grid=(n_steps,),
                in_specs=[
                    pl.BlockSpec((bt, W_pad, E), lambda i: (i, 0, 0)),
                    pl.BlockSpec((K, E, C_pad), lambda i: (0, 0, 0),
                                 **invariant_kwargs),
                    pl.BlockSpec((1, C_pad), lambda i: (0, 0),
                                 **invariant_kwargs),
                ],
                out_specs=pl.BlockSpec((bt, C_pad), lambda i: (i, 0)),
            ),
            compiler_params=pltpu.CompilerParams(
                # >1 step: shard batch tiles across TensorCores.  A single tiny
                # step is NOT force-split across cores (overhead-dominated).
                dimension_semantics=("parallel" if n_steps > 1 else "arbitrary",),
                # 32 MiB scoped VMEM: safe on v7x (64 MiB physical); size bt down
                # before raising this on v5e/v6e.
                vmem_limit_bytes=32 * 1024 * 1024,
            ),
        )

    try:
        # Grid-invariant weights/bias: single-buffer them (double-buffering a
        # constant block only doubles its VMEM footprint).
        out = build(dict(pipeline_mode=pl.Buffered(1)))(x3, w2, b2)
    except Exception:
        # Fallback for jax versions that reject single-buffering via pipeline_mode;
        # identical results, tiny extra VMEM at these sizes.
        out = build({})(x3, w2, b2)
    return out[:B, :C]


def reference_forward(x, w, b):
    # Independent plain-JAX reference: Conv1d -> ReLU -> max over time.
    B, E, W = x.shape
    C, _, K = w.shape
    L = W - K + 1
    acc = jnp.zeros((B, C, L), jnp.float32)
    for k in range(K):
        acc = acc + jnp.einsum("bew,ce->bcw", x[:, :, k:k + L], w[:, :, k],
                               precision=jax.lax.Precision.HIGHEST)
    acc = acc + b[None, :, None]
    return jnp.max(jnp.maximum(acc, 0.0), axis=2)


if __name__ == "__main__":
    # Module hyperparams: channel_size = embed_size (per the docstring).
    batch = 16
    embed_size = 8
    channel_size = 8
    kernel_size = 3
    m_word = 16

    key = jax.random.PRNGKey(0)
    kx, kw, kb = jax.random.split(key, 3)

    x = jax.random.normal(kx, (batch, embed_size, m_word), dtype=jnp.float32)

    # Deterministic PyTorch-style Conv1d init: U(-bound, bound), bound = 1/sqrt(fan_in)
    fan_in = embed_size * kernel_size
    bound = 1.0 / (fan_in ** 0.5)
    w = jax.random.uniform(kw, (channel_size, embed_size, kernel_size),
                           minval=-bound, maxval=bound, dtype=jnp.float32)
    b = jax.random.uniform(kb, (channel_size,),
                           minval=-bound, maxval=bound, dtype=jnp.float32)

    out = cnn_forward(x, w, b)
    out = jax.block_until_ready(out)

    ref = reference_forward(x, w, b)
    assert out.shape == (batch, channel_size)
    # bf16 inputs + f32 MXU accumulate vs. HIGHEST-precision f32 reference.
    assert jnp.allclose(out, ref, atol=3e-2, rtol=3e-2), (
        float(jnp.max(jnp.abs(out - ref))))

    print("KERNEL_OK")
</pallas_src>

<mosaic_0001>
module attributes {stable_mosaic.version = 11 : i64} {
  func.func @cnn_kernel(%arg0: i32, %arg1: memref<16x24x8xbf16, #tpu.memory_space<vmem>>, %arg2: memref<3x8x128xbf16, #tpu.memory_space<vmem>>, %arg3: memref<1x128xf32, #tpu.memory_space<vmem>>, %arg4: memref<16x128xf32, #tpu.memory_space<vmem>>) attributes {dimension_semantics = [#tpu.dimension_semantics<arbitrary>], iteration_bounds = array<i64: 1>, scalar_prefetch = 0 : i64, scratch_operands = 0 : i64, tpu.core_type = #tpu.core_type<tc>, window_params = [{transform_indices = @transform_0, window_bounds = array<i64: 16, 24, 8>}, {pipeline_mode = #tpu.pipeline_mode<synchronous>, transform_indices = @transform_1, window_bounds = array<i64: 3, 8, 128>}, {pipeline_mode = #tpu.pipeline_mode<synchronous>, transform_indices = @transform_2, window_bounds = array<i64: 1, 128>}, {transform_indices = @transform_3, window_bounds = array<i64: 16, 128>}]} {
    %cst = arith.constant 0.000000e+00 : f32
    %0 = vector.broadcast %cst : f32 to vector<256x128xf32>
    %c0 = arith.constant 0 : index
    %c0_0 = arith.constant 0 : index
    %c0_1 = arith.constant 0 : index
    %1 = vector.load %arg1[%c0, %c0_0, %c0_1] : memref<16x24x8xbf16, #tpu.memory_space<vmem>>, vector<16x16x8xbf16>
    %2 = vector.shape_cast %1 : vector<16x16x8xbf16> to vector<256x8xbf16>
    %c0_2 = arith.constant 0 : index
    %c0_3 = arith.constant 0 : index
    %c0_4 = arith.constant 0 : index
    %3 = vector.load %arg2[%c0_2, %c0_3, %c0_4] : memref<3x8x128xbf16, #tpu.memory_space<vmem>>, vector<1x8x128xbf16>
    %4 = vector.shape_cast %3 : vector<1x8x128xbf16> to vector<8x128xbf16>
    %cst_5 = arith.constant dense<0.000000e+00> : vector<256x128xf32>
    %5 = tpu.matmul %2, %4, %cst_5 {dimension_numbers = #tpu.dot_dimension_numbers<[1], [0], [0], [1], [0, 0, 1, 1], [], []>} : vector<256x8xbf16>, vector<8x128xbf16>, vector<256x128xf32> -> vector<256x128xf32>
    %6 = arith.addf %0, %5 : vector<256x128xf32>
    %c0_6 = arith.constant 0 : index
    %c1 = arith.constant 1 : index
    %c0_7 = arith.constant 0 : index
    %7 = vector.load %arg1[%c0_6, %c1, %c0_7] : memref<16x24x8xbf16, #tpu.memory_space<vmem>>, vector<16x16x8xbf16>
    %8 = vector.shape_cast %7 : vector<16x16x8xbf16> to vector<256x8xbf16>
    %c1_8 = arith.constant 1 : index
    %c0_9 = arith.constant 0 : index
    %c0_10 = arith.constant 0 : index
    %9 = vector.load %arg2[%c1_8, %c0_9, %c0_10] : memref<3x8x128xbf16, #tpu.memory_space<vmem>>, vector<1x8x128xbf16>
    %10 = vector.shape_cast %9 : vector<1x8x128xbf16> to vector<8x128xbf16>
    %cst_11 = arith.constant dense<0.000000e+00> : vector<256x128xf32>
    %11 = tpu.matmul %8, %10, %cst_11 {dimension_numbers = #tpu.dot_dimension_numbers<[1], [0], [0], [1], [0, 0, 1, 1], [], []>} : vector<256x8xbf16>, vector<8x128xbf16>, vector<256x128xf32> -> vector<256x128xf32>
    %12 = arith.addf %6, %11 : vector<256x128xf32>
    %c0_12 = arith.constant 0 : index
    %c2 = arith.constant 2 : index
    %c0_13 = arith.constant 0 : index
    %13 = vector.load %arg1[%c0_12, %c2, %c0_13] : memref<16x24x8xbf16, #tpu.memory_space<vmem>>, vector<16x16x8xbf16>
    %14 = vector.shape_cast %13 : vector<16x16x8xbf16> to vector<256x8xbf16>
    %c2_14 = arith.constant 2 : index
    %c0_15 = arith.constant 0 : index
    %c0_16 = arith.constant 0 : index
    %15 = vector.load %arg2[%c2_14, %c0_15, %c0_16] : memref<3x8x128xbf16, #tpu.memory_space<vmem>>, vector<1x8x128xbf16>
    %16 = vector.shape_cast %15 : vector<1x8x128xbf16> to vector<8x128xbf16>
    %cst_17 = arith.constant dense<0.000000e+00> : vector<256x128xf32>
    %17 = tpu.matmul %14, %16, %cst_17 {dimension_numbers = #tpu.dot_dimension_numbers<[1], [0], [0], [1], [0, 0, 1, 1], [], []>} : vector<256x8xbf16>, vector<8x128xbf16>, vector<256x128xf32> -> vector<256x128xf32>
    %18 = arith.addf %12, %17 : vector<256x128xf32>
    %19 = vector.shape_cast %18 : vector<256x128xf32> to vector<16x16x128xf32>
    %20 = tpu.iota {dimensions = array<i32: 1>} : vector<16x16x128xi32>
    %c14_i32 = arith.constant 14 : i32
    %21 = vector.broadcast %c14_i32 : i32 to vector<16x16x128xi32>
    %22 = arith.cmpi slt, %20, %21 : vector<16x16x128xi32>
    %cst_18 = arith.constant -1.000000e+30 : f32
    %23 = vector.broadcast %cst_18 : f32 to vector<16x16x128xf32>
    %24 = arith.select %22, %19, %23 : vector<16x16x128xi1>, vector<16x16x128xf32>
    %cst_19 = arith.constant dense<0xFF800000> : vector<16x128xf32>
    %25 = vector.multi_reduction <maximumf>, %24, %cst_19 [1] : vector<16x16x128xf32> to vector<16x128xf32>
    %c0_20 = arith.constant 0 : index
    %c0_21 = arith.constant 0 : index
    %26 = vector.load %arg3[%c0_20, %c0_21] : memref<1x128xf32, #tpu.memory_space<vmem>>, vector<1x128xf32>
    %27 = vector.broadcast %26 : vector<1x128xf32> to vector<16x128xf32>
    %28 = arith.addf %25, %27 : vector<16x128xf32>
    %cst_22 = arith.constant 0.000000e+00 : f32
    %29 = vector.broadcast %cst_22 : f32 to vector<16x128xf32>
    %30 = arith.maximumf %28, %29 : vector<16x128xf32>
    %c0_23 = arith.constant 0 : index
    %c0_24 = arith.constant 0 : index
    %31 = vector.load %arg4[%c0_23, %c0_24] : memref<16x128xf32, #tpu.memory_space<vmem>>, vector<16x128xf32>
    tpu.vector_store %arg4[%c0_23, %c0_24], %30 {strides = array<i32>} : memref<16x128xf32, #tpu.memory_space<vmem>>, vector<16x128xf32>,
    return
  }
  func.func @transform_0(%arg0: i32) -> (i32, i32, i32) {
    %c0_i32 = arith.constant 0 : i32
    %c0_i32_0 = arith.constant 0 : i32
    %c0_i32_1 = arith.constant 0 : i32
    return %arg0, %c0_i32, %c0_i32_0 : i32, i32, i32
  }
  func.func @transform_1(%arg0: i32) -> (i32, i32, i32) {
    %c0_i32 = arith.constant 0 : i32
    %c0_i32_0 = arith.constant 0 : i32
    %c0_i32_1 = arith.constant 0 : i32
    %c0_i32_2 = arith.constant 0 : i32
    return %c0_i32, %c0_i32_0, %c0_i32_1 : i32, i32, i32
  }
  func.func @transform_2(%arg0: i32) -> (i32, i32) {
    %c0_i32 = arith.constant 0 : i32
    %c0_i32_0 = arith.constant 0 : i32
    %c0_i32_1 = arith.constant 0 : i32
    return %c0_i32, %c0_i32_0 : i32, i32
  }
  func.func @transform_3(%arg0: i32) -> (i32, i32) {
    %c0_i32 = arith.constant 0 : i32
    %c0_i32_0 = arith.constant 0 : i32
    return %arg0, %c0_i32 : i32, i32
  }
}

module attributes {stable_mosaic.version = 11 : i64} {
  func.func @cnn_kernel(%arg0: i32, %arg1: memref<16x24x8xbf16, #tpu.memory_space<vmem>>, %arg2: memref<3x8x128xbf16, #tpu.memory_space<vmem>>, %arg3: memref<1x128xf32, #tpu.memory_space<vmem>>, %arg4: memref<16x128xf32, #tpu.memory_space<vmem>>) attributes {dimension_semantics = [#tpu.dimension_semantics<arbitrary>], iteration_bounds = array<i64: 1>, scalar_prefetch = 0 : i64, scratch_operands = 0 : i64, tpu.core_type = #tpu.core_type<tc>, window_params = [{transform_indices = @transform_0, window_bounds = array<i64: 16, 24, 8>}, {pipeline_mode = #tpu.pipeline_mode<synchronous>, transform_indices = @transform_1, window_bounds = array<i64: 3, 8, 128>}, {pipeline_mode = #tpu.pipeline_mode<synchronous>, transform_indices = @transform_2, window_bounds = array<i64: 1, 128>}, {transform_indices = @transform_3, window_bounds = array<i64: 16, 128>}]} {
    %cst = arith.constant 0.000000e+00 : f32
    %0 = vector.broadcast %cst : f32 to vector<256x128xf32>
    %c0 = arith.constant 0 : index
    %c0_0 = arith.constant 0 : index
    %c0_1 = arith.constant 0 : index
    %1 = vector.load %arg1[%c0, %c0_0, %c0_1] : memref<16x24x8xbf16, #tpu.memory_space<vmem>>, vector<16x16x8xbf16>
    %2 = vector.shape_cast %1 : vector<16x16x8xbf16> to vector<256x8xbf16>
    %c0_2 = arith.constant 0 : index
    %c0_3 = arith.constant 0 : index
    %c0_4 = arith.constant 0 : index
    %3 = vector.load %arg2[%c0_2, %c0_3, %c0_4] : memref<3x8x128xbf16, #tpu.memory_space<vmem>>, vector<1x8x128xbf16>
    %4 = vector.shape_cast %3 : vector<1x8x128xbf16> to vector<8x128xbf16>
    %cst_5 = arith.constant dense<0.000000e+00> : vector<256x128xf32>
    %5 = tpu.matmul %2, %4, %cst_5 {dimension_numbers = #tpu.dot_dimension_numbers<[1], [0], [0], [1], [0, 0, 1, 1], [], []>} : vector<256x8xbf16>, vector<8x128xbf16>, vector<256x128xf32> -> vector<256x128xf32>
    %6 = arith.addf %0, %5 : vector<256x128xf32>
    %c0_6 = arith.constant 0 : index
    %c1 = arith.constant 1 : index
    %c0_7 = arith.constant 0 : index
    %7 = vector.load %arg1[%c0_6, %c1, %c0_7] : memref<16x24x8xbf16, #tpu.memory_space<vmem>>, vector<16x16x8xbf16>
    %8 = vector.shape_cast %7 : vector<16x16x8xbf16> to vector<256x8xbf16>
    %c1_8 = arith.constant 1 : index
    %c0_9 = arith.constant 0 : index
    %c0_10 = arith.constant 0 : index
    %9 = vector.load %arg2[%c1_8, %c0_9, %c0_10] : memref<3x8x128xbf16, #tpu.memory_space<vmem>>, vector<1x8x128xbf16>
    %10 = vector.shape_cast %9 : vector<1x8x128xbf16> to vector<8x128xbf16>
    %cst_11 = arith.constant dense<0.000000e+00> : vector<256x128xf32>
    %11 = tpu.matmul %8, %10, %cst_11 {dimension_numbers = #tpu.dot_dimension_numbers<[1], [0], [0], [1], [0, 0, 1, 1], [], []>} : vector<256x8xbf16>, vector<8x128xbf16>, vector<256x128xf32> -> vector<256x128xf32>
    %12 = arith.addf %6, %11 : vector<256x128xf32>
    %c0_12 = arith.constant 0 : index
    %c2 = arith.constant 2 : index
    %c0_13 = arith.constant 0 : index
    %13 = vector.load %arg1[%c0_12, %c2, %c0_13] : memref<16x24x8xbf16, #tpu.memory_space<vmem>>, vector<16x16x8xbf16>
    %14 = vector.shape_cast %13 : vector<16x16x8xbf16> to vector<256x8xbf16>
    %c2_14 = arith.constant 2 : index
    %c0_15 = arith.constant 0 : index
    %c0_16 = arith.constant 0 : index
    %15 = vector.load %arg2[%c2_14, %c0_15, %c0_16] : memref<3x8x128xbf16, #tpu.memory_space<vmem>>, vector<1x8x128xbf16>
    %16 = vector.shape_cast %15 : vector<1x8x128xbf16> to vector<8x128xbf16>
    %cst_17 = arith.constant dense<0.000000e+00> : vector<256x128xf32>
    %17 = tpu.matmul %14, %16, %cst_17 {dimension_numbers = #tpu.dot_dimension_numbers<[1], [0], [0], [1], [0, 0, 1, 1], [], []>} : vector<256x8xbf16>, vector<8x128xbf16>, vector<256x128xf32> -> vector<256x128xf32>
    %18 = arith.addf %12, %17 : vector<256x128xf32>
    %19 = vector.shape_cast %18 : vector<256x128xf32> to vector<16x16x128xf32>
    %20 = tpu.iota {dimensions = array<i32: 1>} : vector<16x16x128xi32>
    %c14_i32 = arith.constant 14 : i32
    %21 = vector.broadcast %c14_i32 : i32 to vector<16x16x128xi32>
    %22 = arith.cmpi slt, %20, %21 : vector<16x16x128xi32>
    %cst_18 = arith.constant -1.000000e+30 : f32
    %23 = vector.broadcast %cst_18 : f32 to vector<16x16x128xf32>
    %24 = arith.select %22, %19, %23 : vector<16x16x128xi1>, vector<16x16x128xf32>
    %cst_19 = arith.constant dense<0xFF800000> : vector<16x128xf32>
    %25 = vector.multi_reduction <maximumf>, %24, %cst_19 [1] : vector<16x16x128xf32> to vector<16x128xf32>
    %c0_20 = arith.constant 0 : index
    %c0_21 = arith.constant 0 : index
    %26 = vector.load %arg3[%c0_20, %c0_21] : memref<1x128xf32, #tpu.memory_space<vmem>>, vector<1x128xf32>
    %27 = vector.broadcast %26 : vector<1x128xf32> to vector<16x128xf32>
    %28 = arith.addf %25, %27 : vector<16x128xf32>
    %cst_22 = arith.constant 0.000000e+00 : f32
    %29 = vector.broadcast %cst_22 : f32 to vector<16x128xf32>
    %30 = arith.maximumf %28, %29 : vector<16x128xf32>
    %c0_23 = arith.constant 0 : index
    %c0_24 = arith.constant 0 : index
    %31 = vector.load %arg4[%c0_23, %c0_24] : memref<16x128xf32, #tpu.memory_space<vmem>>, vector<16x128xf32>
    tpu.vector_store %arg4[%c0_23, %c0_24], %30 {strides = array<i32>} : memref<16x128xf32, #tpu.memory_space<vmem>>, vector<16x128xf32>,
    return
  }
  func.func @transform_0(%arg0: i32) -> (i32, i32, i32) {
    %c0_i32 = arith.constant 0 : i32
    %c0_i32_0 = arith.constant 0 : i32
    %c0_i32_1 = arith.constant 0 : i32
    return %arg0, %c0_i32, %c0_i32_0 : i32, i32, i32
  }
  func.func @transform_1(%arg0: i32) -> (i32, i32, i32) {
    %c0_i32 = arith.constant 0 : i32
    %c0_i32_0 = arith.constant 0 : i32
    %c0_i32_1 = arith.constant 0 : i32
    %c0_i32_2 = arith.constant 0 : i32
    return %c0_i32, %c0_i32_0, %c0_i32_1 : i32, i32, i32
  }
  func.func @transform_2(%arg0: i32) -> (i32, i32) {
    %c0_i32 = arith.constant 0 : i32
    %c0_i32_0 = arith.constant 0 : i32
    %c0_i32_1 = arith.constant 0 : i32
    return %c0_i32, %c0_i32_0 : i32, i32
  }
  func.func @transform_3(%arg0: i32) -> (i32, i32) {
    %c0_i32 = arith.constant 0 : i32
    %c0_i32_0 = arith.constant 0 : i32
    return %arg0, %c0_i32 : i32, i32
  }
}

</mosaic_0001>

<llo_original>
// kernel: tpu_custom_call.1
$region0: #{tpu_custom_call.1}
  #allocation0 [shape = 'u32[]', space=smem, size = 0x4, offset = 0x4, fixed_abs, tag = 'smem constant byte address 0x4 - core index']
  #allocation1 [shape = 'u32[144,128]{1,0:T(1,128)}', space=vmem, size = 0x12000, scoped, tag = 'internal scratch']
  %s0 = inlined_call_operand.vmem [shape: bf16[16,24,8], index: 0, kind: input, shape index: {}]
  %s1 = inlined_call_operand.vmem [shape: bf16[3,8,128], index: 1, kind: input, shape index: {}]
  %s2 = inlined_call_operand.vmem [shape: f32[1,128], index: 2, kind: input, shape index: {}]
  %s3 = inlined_call_operand.hbm [shape: f32[16,128], index: 3, kind: output, shape index: {}]
  %s4 = sld [smem:[#allocation0]]
  $region22: #{tpu_custom_call.1} parent=0
    _
  %s6 = ssub.s32 1, %s4
  %s7 = scalar_select 0, %s6, %s4
  $region1: #{tpu_custom_call.1} parent=0
    #allocation2 [shape = 'u8[8192]{0}', space=vmem, size = 0x2000, scoped, tag = 'output window, operand 0, single buffered']
    #allocation3 [shape = 's32[1]{0}', space=sflag, size = 0x4, scoped, tag = 'scoped memory for tpu_custom_call.1']
    %8 = vsyncpa [#allocation3], 0
    // Predicated region
    $region2: #{tpu_custom_call.1} parent=1 // pred_check
      _
    $region3: #{tpu_custom_call.1} parent=1 // pred_check_branch
      %10 = sbr.rel (0) target = $region5
    $region4: #{tpu_custom_call.1} parent=1 // pred_region
      _
    $region5: #{tpu_custom_call.1} parent=1 // pred_fallthru
      _
    // Predicated region
    $region6: #{tpu_custom_call.1} parent=1 // pred_check
      _
    $region7: #{tpu_custom_call.1} parent=1 // pred_check_branch
      %12 = sbr.rel (0) target = $region9
    $region8: #{tpu_custom_call.1} parent=1 // pred_region
      _
    $region9: #{tpu_custom_call.1} parent=1 // pred_fallthru
      _
    // Predicated region
    $region10: #{tpu_custom_call.1} parent=1 // pred_check
      _
    $region11: #{tpu_custom_call.1} parent=1 // pred_check_branch
      %14 = sbr.rel (0) target = $region13
    $region12: #{tpu_custom_call.1} parent=1 // pred_region
      _
    $region13: #{tpu_custom_call.1} parent=1 // pred_fallthru
      _
    %v16 = vld [vmem:[%s0] sm:$0xf]
    %v17 = vld [vmem:[%s0 + $0x4] sm:$0xf]
    %v18 = vld [vmem:[%s0 + $0xc] sm:$0xf]
    %v19 = vld [vmem:[%s0 + $0x10] sm:$0xf]
    %v20 = vld [vmem:[%s0 + $0x18] sm:$0xf]
    %v21 = vld [vmem:[%s0 + $0x1c] sm:$0xf]
    %v22 = vld [vmem:[%s0 + $0x24] sm:$0xf]
    %v23 = vld [vmem:[%s0 + $0x28] sm:$0xf]
    %v24 = vld [vmem:[%s0 + $0x30] sm:$0xf]
    %v25 = vld [vmem:[%s0 + $0x34] sm:$0xf]
    %v26 = vld [vmem:[%s0 + $0x3c] sm:$0xf]
    %v27 = vld [vmem:[%s0 + $0x40] sm:$0xf]
    %v28 = vld [vmem:[%s0 + $0x48] sm:$0xf]
    %v29 = vld [vmem:[%s0 + $0x4c] sm:$0xf]
    %v30 = vld [vmem:[%s0 + $0x54] sm:$0xf]
    %v31 = vld [vmem:[%s0 + $0x58] sm:$0xf]
    %v32 = vld [vmem:[%s0 + $0x60] sm:$0xf]
    %v33 = vld [vmem:[%s0 + $0x64] sm:$0xf]
    %v34 = vld [vmem:[%s0 + $0x6c] sm:$0xf]
    %v35 = vld [vmem:[%s0 + $0x70] sm:$0xf]
    %v36 = vld [vmem:[%s0 + $0x78] sm:$0xf]
    %v37 = vld [vmem:[%s0 + $0x7c] sm:$0xf]
    %v38 = vld [vmem:[%s0 + $0x84] sm:$0xf]
    %v39 = vld [vmem:[%s0 + $0x88] sm:$0xf]
    %v40 = vld [vmem:[%s0 + $0x90] sm:$0xf]
    %v41 = vld [vmem:[%s0 + $0x94] sm:$0xf]
    %v42 = vld [vmem:[%s0 + $0x9c] sm:$0xf]
    %v43 = vld [vmem:[%s0 + $0xa0] sm:$0xf]
    %v44 = vld [vmem:[%s0 + $0xa8] sm:$0xf]
    %v45 = vld [vmem:[%s0 + $0xac] sm:$0xf]
    %v46 = vld [vmem:[%s0 + $0xb4] sm:$0xf]
    %v47 = vld [vmem:[%s0 + $0xb8] sm:$0xf]
    %v48 = vld [vmem:[%s1] sm:$0xf]
    %v49 = vld [vmem:[%s0 + $0x8] sm:$0x1]
    %v50 = vld [vmem:[%s0 + $0x14] sm:$0x1]
    %v51 = vld [vmem:[%s0 + $0x20] sm:$0x1]
    %v52 = vld [vmem:[%s0 + $0x2c] sm:$0x1]
    %v53 = vld [vmem:[%s0 + $0x38] sm:$0x1]
    %v54 = vld [vmem:[%s0 + $0x44] sm:$0x1]
    %v55 = vld [vmem:[%s0 + $0x50] sm:$0x1]
    %v56 = vld [vmem:[%s0 + $0x5c] sm:$0x1]
    %v57 = vld [vmem:[%s0 + $0x68] sm:$0x1]
    %v58 = vld [vmem:[%s0 + $0x74] sm:$0x1]
    %v59 = vld [vmem:[%s0 + $0x80] sm:$0x1]
    %v60 = vld [vmem:[%s0 + $0x8c] sm:$0x1]
    %v61 = vld [vmem:[%s0 + $0x98] sm:$0x1]
    %v62 = vld [vmem:[%s0 + $0xa4] sm:$0x1]
    %v63 = vld [vmem:[%s0 + $0xb0] sm:$0x1]
    %v64 = vld [vmem:[%s0 + $0xbc] sm:$0x1]
    %vm65 = vsmask.f32 3328
    %vm66 = vsmask.f32 7440
    %vm67 = vmor %vm65, %vm66
    %v69 = vshrl.u32 %v16, 16
    %v71 = vrot.slane %v69, 4
    %v72 = vshll.u32 %v16, 16
    %v74 = vrot.slane %v72, 5
    %v75 = vor.u32 %v71, %v74
    %v76 = vrot.slane %v75, 4
    %v78 = vshll.u32 %v17, 16
    %v80 = vrot.slane %v78, 5
    %v81 = vsel %vm67, %v76, %v80
    %v82 = vshrl.u32 %v17, 16
    %v84 = vrot.slane %v82, 4
    %v85 = vor.u32 %v84, %v80
    %v86 = vrot.slane %v85, 4
    %v88 = vshll.u32 %v49, 16
    %v90 = vrot.slane %v88, 5
    %v91 = vsel %vm67, %v86, %v90
    %v93 = vshrl.u32 %v18, 16
    %v95 = vrot.slane %v93, 4
    %v96 = vshll.u32 %v18, 16
    %v98 = vrot.slane %v96, 5
    %v99 = vor.u32 %v95, %v98
    %v100 = vrot.slane %v99, 4
    %v102 = vshll.u32 %v19, 16
    %v104 = vrot.slane %v102, 5
    %v105 = vsel %vm67, %v100, %v104
    %v106 = vshrl.u32 %v19, 16
    %v108 = vrot.slane %v106, 4
    %v109 = vor.u32 %v108, %v104
    %v110 = vrot.slane %v109, 4
    %v112 = vshll.u32 %v50, 16
    %v114 = vrot.slane %v112, 5
    %v115 = vsel %vm67, %v110, %v114
    %v117 = vshrl.u32 %v20, 16
    %v119 = vrot.slane %v117, 4
    %v120 = vshll.u32 %v20, 16
    %v122 = vrot.slane %v120, 5
    %v123 = vor.u32 %v119, %v122
    %v124 = vrot.slane %v123, 4
    %v126 = vshll.u32 %v21, 16
    %v128 = vrot.slane %v126, 5
    %v129 = vsel %vm67, %v124, %v128
    %v130 = vshrl.u32 %v21, 16
    %v132 = vrot.slane %v130, 4
    %v133 = vor.u32 %v132, %v128
    %v134 = vrot.slane %v133, 4
    %v136 = vshll.u32 %v51, 16
    %v138 = vrot.slane %v136, 5
    %v139 = vsel %vm67, %v134, %v138
    %v141 = vshrl.u32 %v22, 16
    %v143 = vrot.slane %v141, 4
    %v144 = vshll.u32 %v22, 16
    %v146 = vrot.slane %v144, 5
    %v147 = vor.u32 %v143, %v146
    %v148 = vrot.slane %v147, 4
    %v150 = vshll.u32 %v23, 16
    %v152 = vrot.slane %v150, 5
    %v153 = vsel %vm67, %v148, %v152
    %v154 = vshrl.u32 %v23, 16
    %v156 = vrot.slane %v154, 4
    %v157 = vor.u32 %v156, %v152
    %v158 = vrot.slane %v157, 4
    %v160 = vshll.u32 %v52, 16
    %v162 = vrot.slane %v160, 5
    %v163 = vsel %vm67, %v158, %v162
    %v165 = vshrl.u32 %v24, 16
    %v167 = vrot.slane %v165, 4
    %v168 = vshll.u32 %v24, 16
    %v170 = vrot.slane %v168, 5
    %v171 = vor.u32 %v167, %v170
    %v172 = vrot.slane %v171, 4
    %v174 = vshll.u32 %v25, 16
    %v176 = vrot.slane %v174, 5
    %v177 = vsel %vm67, %v172, %v176
    %v178 = vshrl.u32 %v25, 16
    %v180 = vrot.slane %v178, 4
    %v181 = vor.u32 %v180, %v176
    %v182 = vrot.slane %v181, 4
    %v184 = vshll.u32 %v53, 16
    %v186 = vrot.slane %v184, 5
    %v187 = vsel %vm67, %v182, %v186
    %v189 = vshrl.u32 %v26, 16
    %v191 = vrot.slane %v189, 4
    %v192 = vshll.u32 %v26, 16
    %v194 = vrot.slane %v192, 5
    %v195 = vor.u32 %v191, %v194
    %v196 = vrot.slane %v195, 4
    %v198 = vshll.u32 %v27, 16
    %v200 = vrot.slane %v198, 5
    %v201 = vsel %vm67, %v196, %v200
    %v202 = vshrl.u32 %v27, 16
    %v204 = vrot.slane %v202, 4
    %v205 = vor.u32 %v204, %v200
    %v206 = vrot.slane %v205, 4
    %v208 = vshll.u32 %v54, 16
    %v210 = vrot.slane %v208, 5
    %v211 = vsel %vm67, %v206, %v210
    %v213 = vshrl.u32 %v28, 16
    %v215 = vrot.slane %v213, 4
    %v216 = vshll.u32 %v28, 16
    %v218 = vrot.slane %v216, 5
    %v219 = vor.u32 %v215, %v218
    %v220 = vrot.slane %v219, 4
    %v222 = vshll.u32 %v29, 16
    %v224 = vrot.slane %v222, 5
    %v225 = vsel %vm67, %v220, %v224
    %v226 = vshrl.u32 %v29, 16
    %v228 = vrot.slane %v226, 4
    %v229 = vor.u32 %v228, %v224
    %v230 = vrot.slane %v229, 4
    %v232 = vshll.u32 %v55, 16
    %v234 = vrot.slane %v232, 5
    %v235 = vsel %vm67, %v230, %v234
    %v237 = vshrl.u32 %v30, 16
    %v239 = vrot.slane %v237, 4
    %v240 = vshll.u32 %v30, 16
    %v242 = vrot.slane %v240, 5
    %v243 = vor.u32 %v239, %v242
    %v244 = vrot.slane %v243, 4
    %v246 = vshll.u32 %v31, 16
    %v248 = vrot.slane %v246, 5
    %v249 = vsel %vm67, %v244, %v248
    %v250 = vshrl.u32 %v31, 16
    %v252 = vrot.slane %v250, 4
    %v253 = vor.u32 %v252, %v248
    %v254 = vrot.slane %v253, 4
    %v256 = vshll.u32 %v56, 16
    %v258 = vrot.slane %v256, 5
    %v259 = vsel %vm67, %v254, %v258
    %v261 = vshrl.u32 %v32, 16
    %v263 = vrot.slane %v261, 4
    %v264 = vshll.u32 %v32, 16
    %v266 = vrot.slane %v264, 5
    %v267 = vor.u32 %v263, %v266
    %v268 = vrot.slane %v267, 4
    %v270 = vshll.u32 %v33, 16
    %v272 = vrot.slane %v270, 5
    %v273 = vsel %vm67, %v268, %v272
    %v274 = vshrl.u32 %v33, 16
    %v276 = vrot.slane %v274, 4
    %v277 = vor.u32 %v276, %v272
    %v278 = vrot.slane %v277, 4
    %v280 = vshll.u32 %v57, 16
    %v282 = vrot.slane %v280, 5
    %v283 = vsel %vm67, %v278, %v282
    %v285 = vshrl.u32 %v34, 16
    %v287 = vrot.slane %v285, 4
    %v288 = vshll.u32 %v34, 16
    %v290 = vrot.slane %v288, 5
    %v291 = vor.u32 %v287, %v290
    %v292 = vrot.slane %v291, 4
    %v294 = vshll.u32 %v35, 16
    %v296 = vrot.slane %v294, 5
    %v297 = vsel %vm67, %v292, %v296
    %v298 = vshrl.u32 %v35, 16
    %v300 = vrot.slane %v298, 4
    %v301 = vor.u32 %v300, %v296
    %v302 = vrot.slane %v301, 4
    %v304 = vshll.u32 %v58, 16
    %v306 = vrot.slane %v304, 5
    %v307 = vsel %vm67, %v302, %v306
    %v309 = vshrl.u32 %v36, 16
    %v311 = vrot.slane %v309, 4
    %v312 = vshll.u32 %v36, 16
    %v314 = vrot.slane %v312, 5
    %v315 = vor.u32 %v311, %v314
    %v316 = vrot.slane %v315, 4
    %v318 = vshll.u32 %v37, 16
    %v320 = vrot.slane %v318, 5
    %v321 = vsel %vm67, %v316, %v320
    %v322 = vshrl.u32 %v37, 16
    %v324 = vrot.slane %v322, 4
    %v325 = vor.u32 %v324, %v320
    %v326 = vrot.slane %v325, 4
    %v328 = vshll.u32 %v59, 16
    %v330 = vrot.slane %v328, 5
    %v331 = vsel %vm67, %v326, %v330
    %v333 = vshrl.u32 %v38, 16
    %v335 = vrot.slane %v333, 4
    %v336 = vshll.u32 %v38, 16
    %v338 = vrot.slane %v336, 5
    %v339 = vor.u32 %v335, %v338
    %v340 = vrot.slane %v339, 4
    %v342 = vshll.u32 %v39, 16
    %v344 = vrot.slane %v342, 5
    %v345 = vsel %vm67, %v340, %v344
    %v346 = vshrl.u32 %v39, 16
    %v348 = vrot.slane %v346, 4
    %v349 = vor.u32 %v348, %v344
    %v350 = vrot.slane %v349, 4
    %v352 = vshll.u32 %v60, 16
    %v354 = vrot.slane %v352, 5
    %v355 = vsel %vm67, %v350, %v354
    %v357 = vshrl.u32 %v40, 16
    %v359 = vrot.slane %v357, 4
    %v360 = vshll.u32 %v40, 16
    %v362 = vrot.slane %v360, 5
    %v363 = vor.u32 %v359, %v362
    %v364 = vrot.slane %v363, 4
    %v366 = vshll.u32 %v41, 16
    %v368 = vrot.slane %v366, 5
    %v369 = vsel %vm67, %v364, %v368
    %v370 = vshrl.u32 %v41, 16
    %v372 = vrot.slane %v370, 4
    %v373 = vor.u32 %v372, %v368
    %v374 = vrot.slane %v373, 4
    %v376 = vshll.u32 %v61, 16
    %v378 = vrot.slane %v376, 5
    %v379 = vsel %vm67, %v374, %v378
    %v381 = vshrl.u32 %v42, 16
    %v383 = vrot.slane %v381, 4
    %v384 = vshll.u32 %v42, 16
    %v386 = vrot.slane %v384, 5
    %v387 = vor.u32 %v383, %v386
    %v388 = vrot.slane %v387, 4
    %v390 = vshll.u32 %v43, 16
    %v392 = vrot.slane %v390, 5
    %v393 = vsel %vm67, %v388, %v392
    %v394 = vshrl.u32 %v43, 16
    %v396 = vrot.slane %v394, 4
    %v397 = vor.u32 %v396, %v392
    %v398 = vrot.slane %v397, 4
    %v400 = vshll.u32 %v62, 16
    %v402 = vrot.slane %v400, 5
    %v403 = vsel %vm67, %v398, %v402
    %v405 = vshrl.u32 %v44, 16
    %v407 = vrot.slane %v405, 4
    %v408 = vshll.u32 %v44, 16
    %v410 = vrot.slane %v408, 5
    %v411 = vor.u32 %v407, %v410
    %v412 = vrot.slane %v411, 4
    %v414 = vshll.u32 %v45, 16
    %v416 = vrot.slane %v414, 5
    %v417 = vsel %vm67, %v412, %v416
    %v418 = vshrl.u32 %v45, 16
    %v420 = vrot.slane %v418, 4
    %v421 = vor.u32 %v420, %v416
    %v422 = vrot.slane %v421, 4
    %v424 = vshll.u32 %v63, 16
    %v426 = vrot.slane %v424, 5
    %v427 = vsel %vm67, %v422, %v426
    %v429 = vshrl.u32 %v46, 16
    %v431 = vrot.slane %v429, 4
    %v432 = vshll.u32 %v46, 16
    %v434 = vrot.slane %v432, 5
    %v435 = vor.u32 %v431, %v434
    %v436 = vrot.slane %v435, 4
    %v438 = vshll.u32 %v47, 16
    %v440 = vrot.slane %v438, 5
    %v441 = vsel %vm67, %v436, %v440
    %v442 = vshrl.u32 %v47, 16
    %v444 = vrot.slane %v442, 4
    %v445 = vor.u32 %v444, %v440
    %v446 = vrot.slane %v445, 4
    %v448 = vshll.u32 %v64, 16
    %v450 = vrot.slane %v448, 5
    %v451 = vsel %vm67, %v446, %v450
    %s452 = scalar_lea.vmem %s1, 4
    %v453 = vld [vmem:[%s452] sm:$0xf]
    %v454 = vunpack.c.l.b16 %v81
    %v455 = vunpack.c.l.b16 %v91
    %v456 = vunpack.c.l.b16 %v105
    %v457 = vunpack.c.l.b16 %v115
    %v458 = vunpack.c.l.b16 %v129
    %v459 = vunpack.c.l.b16 %v139
    %v460 = vunpack.c.l.b16 %v153
    %v461 = vunpack.c.l.b16 %v163
    %v462 = vunpack.c.l.b16 %v177
    %v463 = vunpack.c.l.b16 %v187
    %v464 = vunpack.c.l.b16 %v201
    %v465 = vunpack.c.l.b16 %v211
    %v466 = vunpack.c.l.b16 %v225
    %v467 = vunpack.c.l.b16 %v235
    %v468 = vunpack.c.l.b16 %v249
    %v469 = vunpack.c.l.b16 %v259
    %v470 = vunpack.c.l.b16 %v273
    %v471 = vunpack.c.l.b16 %v283
    %v472 = vunpack.c.l.b16 %v297
    %v473 = vunpack.c.l.b16 %v307
    %v474 = vunpack.c.l.b16 %v321
    %v475 = vunpack.c.l.b16 %v331
    %v476 = vunpack.c.l.b16 %v345
    %v477 = vunpack.c.l.b16 %v355
    %v478 = vunpack.c.l.b16 %v369
    %v479 = vunpack.c.l.b16 %v379
    %v480 = vunpack.c.l.b16 %v393
    %v481 = vunpack.c.l.b16 %v403
    %v482 = vunpack.c.l.b16 %v417
    %v483 = vunpack.c.l.b16 %v427
    %v484 = vunpack.c.l.b16 %v441
    %v485 = vunpack.c.l.b16 %v451
    %v486 = vpack.c.b16 %v455, %v454
    %v487 = vpack.c.b16 %v457, %v456
    %v488 = vpack.c.b16 %v459, %v458
    %v489 = vpack.c.b16 %v461, %v460
    %v490 = vpack.c.b16 %v463, %v462
    %v491 = vpack.c.b16 %v465, %v464
    %v492 = vpack.c.b16 %v467, %v466
    %v493 = vpack.c.b16 %v469, %v468
    %v494 = vpack.c.b16 %v471, %v470
    %v495 = vpack.c.b16 %v473, %v472
    %v496 = vpack.c.b16 %v475, %v474
    %v497 = vpack.c.b16 %v477, %v476
    %v498 = vpack.c.b16 %v479, %v478
    %v499 = vpack.c.b16 %v481, %v480
    %v500 = vpack.c.b16 %v483, %v482
    %v501 = vpack.c.b16 %v485, %v484
    %vm502 = vcmask 64512
    %v504 = vsel %vm502, %v486, 0
    %v507 = vsel %vm502, %v487, 0
    %v510 = vsel %vm502, %v488, 0
    %v513 = vsel %vm502, %v489, 0
    %v516 = vsel %vm502, %v490, 0
    %v519 = vsel %vm502, %v491, 0
    %v522 = vsel %vm502, %v492, 0
    %v525 = vsel %vm502, %v493, 0
    %v528 = vsel %vm502, %v494, 0
    %v531 = vsel %vm502, %v495, 0
    %v534 = vsel %vm502, %v496, 0
    %v537 = vsel %vm502, %v497, 0
    %v540 = vsel %vm502, %v498, 0
    %v543 = vsel %vm502, %v499, 0
    %v546 = vsel %vm502, %v500, 0
    %v549 = vsel %vm502, %v501, 0
    %vm551 = vcmask 1043456
    %v553 = vsel %vm551, %v453, 0
    %555 = vmatprep.subr.bf16.mxu0 0
    %556 = vmatpush1.bf16.msra.mxu0 0
    %557 = vmatprep.subr.bf16.mxu0 0
    %558 = vmatpush1.bf16.msra.mxu0 0
    %559 = vmatprep.subr.bf16.mxu0 0
    %560 = vmatpush1.bf16.msra.mxu0 0
    %561 = vmatprep.subr.bf16.mxu0 0
    %562 = vmatpush1.bf16.msra.mxu0 0
    %563 = vmatprep.subr.bf16.mxu0 0
    %564 = vmatpush1.bf16.msra.mxu0 0
    %565 = vmatprep.subr.bf16.mxu0 0
    %566 = vmatpush1.bf16.msra.mxu0 0
    %567 = vmatprep.subr.bf16.mxu0 0
    %568 = vmatpush1.bf16.msra.mxu0 0
    %569 = vmatprep.subr.bf16.mxu0 0
    %570 = vmatpush1.bf16.msra.mxu0 %v553
    %571 = vmatprep.subr.bf16.mxu0 0
    %572 = vmatpush2.bf16.msra.mxu0 0
    %573 = vmatprep.subr.bf16.mxu0 0
    %574 = vmatpush2.bf16.msra.mxu0 0
    %575 = vmatprep.subr.bf16.mxu0 0
    %576 = vmatpush2.bf16.msra.mxu0 0
    %577 = vmatprep.subr.bf16.mxu0 0
    %578 = vmatpush2.bf16.msra.mxu0 0
    %579 = vmatprep.subr.bf16.mxu0 0
    %580 = vmatpush2.bf16.msra.mxu0 0
    %581 = vmatprep.subr.bf16.mxu0 0
    %582 = vmatpush2.bf16.msra.mxu0 0
    %583 = vmatprep.subr.bf16.mxu0 0
    %584 = vmatpush2.bf16.msra.mxu0 0
    %585 = vmatprep.subr.bf16.mxu0 0
    %586 = vmatpush2.bf16.msra.mxu0 0
    %587 = vmatprep.mubr.bf16.mxu0 0
    %588 = vmatmul.mubr.bf16.gmra.mxu0 %v504
    %v589 = vpop.f32.mrf.mxu0
    %v590 = vadd.f32 0.0, %v589
    %v591 = vpop.f32.mrf.mxu0
    %v592 = vpop.f32.mrf.mxu0
    %v593 = vadd.f32 0.0, %v592
    %v594 = vpop.f32.mrf.mxu0
    %595 = vmatprep.mubr.bf16.mxu0 0
    %596 = vmatmul.mubr.bf16.gmra.mxu0 %v507
    %v597 = vpop.f32.mrf.mxu0
    %v598 = vadd.f32 0.0, %v597
    %v599 = vpop.f32.mrf.mxu0
    %v600 = vpop.f32.mrf.mxu0
    %v601 = vadd.f32 0.0, %v600
    %v602 = vpop.f32.mrf.mxu0
    %603 = vmatprep.mubr.bf16.mxu0 0
    %604 = vmatmul.mubr.bf16.gmra.mxu0 %v510
    %v605 = vpop.f32.mrf.mxu0
    %v606 = vadd.f32 0.0, %v605
    %v607 = vpop.f32.mrf.mxu0
    %v608 = vpop.f32.mrf.mxu0
    %v609 = vadd.f32 0.0, %v608
    %v610 = vpop.f32.mrf.mxu0
    %611 = vmatprep.mubr.bf16.mxu0 0
    %612 = vmatmul.mubr.bf16.gmra.mxu0 %v513
    %v613 = vpop.f32.mrf.mxu0
    %v614 = vadd.f32 0.0, %v613
    %v615 = vpop.f32.mrf.mxu0
    %v616 = vpop.f32.mrf.mxu0
    %v617 = vadd.f32 0.0, %v616
    %v618 = vpop.f32.mrf.mxu0
    %619 = vmatprep.mubr.bf16.mxu0 0
    %620 = vmatmul.mubr.bf16.gmra.mxu0 %v516
    %v621 = vpop.f32.mrf.mxu0
    %v622 = vadd.f32 0.0, %v621
    %v623 = vpop.f32.mrf.mxu0
    %v624 = vpop.f32.mrf.mxu0
    %v625 = vadd.f32 0.0, %v624
    %v626 = vpop.f32.mrf.mxu0
    %627 = vmatprep.mubr.bf16.mxu0 0
    %628 = vmatmul.mubr.bf16.gmra.mxu0 %v519
    %v629 = vpop.f32.mrf.mxu0
    %v630 = vadd.f32 0.0, %v629
    %v631 = vpop.f32.mrf.mxu0
    %v632 = vpop.f32.mrf.mxu0
    %v633 = vadd.f32 0.0, %v632
    %v634 = vpop.f32.mrf.mxu0
    %635 = vmatprep.mubr.bf16.mxu0 0
    %636 = vmatmul.mubr.bf16.gmra.mxu0 %v522
    %v637 = vpop.f32.mrf.mxu0
    %v638 = vadd.f32 0.0, %v637
    %v639 = vpop.f32.mrf.mxu0
    %v640 = vpop.f32.mrf.mxu0
    %v641 = vadd.f32 0.0, %v640
    %v642 = vpop.f32.mrf.mxu0
    %643 = vmatprep.mubr.bf16.mxu0 0
    %644 = vmatmul.mubr.bf16.gmra.mxu0 %v525
    %v645 = vpop.f32.mrf.mxu0
    %v646 = vadd.f32 0.0, %v645
    %v647 = vpop.f32.mrf.mxu0
    %v648 = vpop.f32.mrf.mxu0
    %v649 = vadd.f32 0.0, %v648
    %v650 = vpop.f32.mrf.mxu0
    %651 = vmatprep.mubr.bf16.mxu0 0
    %652 = vmatmul.mubr.bf16.gmra.mxu0 %v528
    %v653 = vpop.f32.mrf.mxu0
    %v654 = vadd.f32 0.0, %v653
    %v655 = vpop.f32.mrf.mxu0
    %v656 = vpop.f32.mrf.mxu0
    %v657 = vadd.f32 0.0, %v656
    %v658 = vpop.f32.mrf.mxu0
    %659 = vmatprep.mubr.bf16.mxu0 0
    %660 = vmatmul.mubr.bf16.gmra.mxu0 %v531
    %v661 = vpop.f32.mrf.mxu0
    %v662 = vadd.f32 0.0, %v661
    %v663 = vpop.f32.mrf.mxu0
    %v664 = vpop.f32.mrf.mxu0
    %v665 = vadd.f32 0.0, %v664
    %v666 = vpop.f32.mrf.mxu0
    %667 = vmatprep.mubr.bf16.mxu0 0
    %668 = vmatmul.mubr.bf16.gmra.mxu0 %v534
    %v669 = vpop.f32.mrf.mxu0
    %v670 = vadd.f32 0.0, %v669
    %v671 = vpop.f32.mrf.mxu0
    %v672 = vpop.f32.mrf.mxu0
    %v673 = vadd.f32 0.0, %v672
    %v674 = vpop.f32.mrf.mxu0
    %675 = vmatprep.mubr.bf16.mxu0 0
    %676 = vmatmul.mubr.bf16.gmra.mxu0 %v537
    %v677 = vpop.f32.mrf.mxu0
    %v678 = vadd.f32 0.0, %v677
    %v679 = vpop.f32.mrf.mxu0
    %v680 = vpop.f32.mrf.mxu0
    %v681 = vadd.f32 0.0, %v680
    %v682 = vpop.f32.mrf.mxu0
    %683 = vmatprep.mubr.bf16.mxu0 0
    %684 = vmatmul.mubr.bf16.gmra.mxu0 %v540
    %v685 = vpop.f32.mrf.mxu0
    %v686 = vadd.f32 0.0, %v685
    %v687 = vpop.f32.mrf.mxu0
    %v688 = vpop.f32.mrf.mxu0
    %v689 = vadd.f32 0.0, %v688
    %v690 = vpop.f32.mrf.mxu0
    %691 = vmatprep.mubr.bf16.mxu0 0
    %692 = vmatmul.mubr.bf16.gmra.mxu0 %v543
    %v693 = vpop.f32.mrf.mxu0
    %v694 = vadd.f32 0.0, %v693
    %v695 = vpop.f32.mrf.mxu0
    %v696 = vpop.f32.mrf.mxu0
    %v697 = vadd.f32 0.0, %v696
    %v698 = vpop.f32.mrf.mxu0
    %699 = vmatprep.mubr.bf16.mxu0 0
    %700 = vmatmul.mubr.bf16.gmra.mxu0 %v546
    %v701 = vpop.f32.mrf.mxu0
    %v702 = vadd.f32 0.0, %v701
    %v703 = vpop.f32.mrf.mxu0
    %v704 = vpop.f32.mrf.mxu0
    %v705 = vadd.f32 0.0, %v704
    %v706 = vpop.f32.mrf.mxu0
    %707 = vmatprep.mubr.bf16.mxu0 0
    %708 = vmatmul.mubr.bf16.gmra.mxu0 %v549
    %v709 = vpop.f32.mrf.mxu0
    %v710 = vadd.f32 0.0, %v709
    %v711 = vpop.f32.mrf.mxu0
    %v712 = vpop.f32.mrf.mxu0
    %v713 = vadd.f32 0.0, %v712
    %v714 = vpop.f32.mrf.mxu0
    %715 = vdwg.mxu0
    %v748 = vunpack.c.l.b16 %v16
    %v749 = vunpack.c.l.b16 %v17
    %v750 = vunpack.c.l.b16 %v18
    %v751 = vunpack.c.l.b16 %v19
    %v752 = vunpack.c.l.b16 %v20
    %v753 = vunpack.c.l.b16 %v21
    %v754 = vunpack.c.l.b16 %v22
    %v755 = vunpack.c.l.b16 %v23
    %v756 = vunpack.c.l.b16 %v24
    %v757 = vunpack.c.l.b16 %v25
    %v758 = vunpack.c.l.b16 %v26
    %v759 = vunpack.c.l.b16 %v27
    %v760 = vunpack.c.l.b16 %v28
    %v761 = vunpack.c.l.b16 %v29
    %v762 = vunpack.c.l.b16 %v30
    %v763 = vunpack.c.l.b16 %v31
    %v764 = vunpack.c.l.b16 %v32
    %v765 = vunpack.c.l.b16 %v33
    %v766 = vunpack.c.l.b16 %v34
    %v767 = vunpack.c.l.b16 %v35
    %v768 = vunpack.c.l.b16 %v36
    %v769 = vunpack.c.l.b16 %v37
    %v770 = vunpack.c.l.b16 %v38
    %v771 = vunpack.c.l.b16 %v39
    %v772 = vunpack.c.l.b16 %v40
    %v773 = vunpack.c.l.b16 %v41
    %v774 = vunpack.c.l.b16 %v42
    %v775 = vunpack.c.l.b16 %v43
    %v776 = vunpack.c.l.b16 %v44
    %v777 = vunpack.c.l.b16 %v45
    %v778 = vunpack.c.l.b16 %v46
    %v779 = vunpack.c.l.b16 %v47
    %v780 = vpack.c.b16 %v749, %v748
    %v781 = vpack.c.b16 %v751, %v750
    %v782 = vpack.c.b16 %v753, %v752
    %v783 = vpack.c.b16 %v755, %v754
    %v784 = vpack.c.b16 %v757, %v756
    %v785 = vpack.c.b16 %v759, %v758
    %v786 = vpack.c.b16 %v761, %v760
    %v787 = vpack.c.b16 %v763, %v762
    %v788 = vpack.c.b16 %v765, %v764
    %v789 = vpack.c.b16 %v767, %v766
    %v790 = vpack.c.b16 %v769, %v768
    %v791 = vpack.c.b16 %v771, %v770
    %v792 = vpack.c.b16 %v773, %v772
    %v793 = vpack.c.b16 %v775, %v774
    %v794 = vpack.c.b16 %v777, %v776
    %v795 = vpack.c.b16 %v779, %v778
    %v797 = vsel %vm502, %v780, 0
    %v800 = vsel %vm502, %v781, 0
    %v803 = vsel %vm502, %v782, 0
    %v806 = vsel %vm502, %v783, 0
    %v809 = vsel %vm502, %v784, 0
    %v812 = vsel %vm502, %v785, 0
    %v815 = vsel %vm502, %v786, 0
    %v818 = vsel %vm502, %v787, 0
    %v821 = vsel %vm502, %v788, 0
    %v824 = vsel %vm502, %v789, 0
    %v827 = vsel %vm502, %v790, 0
    %v830 = vsel %vm502, %v791, 0
    %v833 = vsel %vm502, %v792, 0
    %v836 = vsel %vm502, %v793, 0
    %v839 = vsel %vm502, %v794, 0
    %v842 = vsel %vm502, %v795, 0
    %v845 = vsel %vm551, %v48, 0
    %847 = vmatprep.subr.bf16.mxu0 0
    %848 = vmatpush1.bf16.msra.mxu0 0
    %849 = vmatprep.subr.bf16.mxu0 0
    %850 = vmatpush1.bf16.msra.mxu0 0
    %851 = vmatprep.subr.bf16.mxu0 0
    %852 = vmatpush1.bf16.msra.mxu0 0
    %853 = vmatprep.subr.bf16.mxu0 0
    %854 = vmatpush1.bf16.msra.mxu0 0
    %855 = vmatprep.subr.bf16.mxu0 0
    %856 = vmatpush1.bf16.msra.mxu0 0
    %857 = vmatprep.subr.bf16.mxu0 0
    %858 = vmatpush1.bf16.msra.mxu0 0
    %859 = vmatprep.subr.bf16.mxu0 0
    %860 = vmatpush1.bf16.msra.mxu0 0
    %861 = vmatprep.subr.bf16.mxu0 0
    %862 = vmatpush1.bf16.msra.mxu0 %v845
    %863 = vmatprep.subr.bf16.mxu0 0
    %864 = vmatpush2.bf16.msra.mxu0 0
    %865 = vmatprep.subr.bf16.mxu0 0
    %866 = vmatpush2.bf16.msra.mxu0 0
    %867 = vmatprep.subr.bf16.mxu0 0
    %868 = vmatpush2.bf16.msra.mxu0 0
    %869 = vmatprep.subr.bf16.mxu0 0
    %870 = vmatpush2.bf16.msra.mxu0 0
    %871 = vmatprep.subr.bf16.mxu0 0
    %872 = vmatpush2.bf16.msra.mxu0 0
    %873 = vmatprep.subr.bf16.mxu0 0
    %874 = vmatpush2.bf16.msra.mxu0 0
    %875 = vmatprep.subr.bf16.mxu0 0
    %876 = vmatpush2.bf16.msra.mxu0 0
    %877 = vmatprep.subr.bf16.mxu0 0
    %878 = vmatpush2.bf16.msra.mxu0 0
    %879 = vmatprep.mubr.bf16.mxu0 0
    %880 = vmatmul.mubr.bf16.gmra.mxu0 %v797
    %v881 = vpop.f32.mrf.mxu0
    %v882 = vadd.f32 %v590, %v881
    %v883 = vpop.f32.mrf.mxu0
    %v884 = vpop.f32.mrf.mxu0
    %v885 = vadd.f32 %v593, %v884
    %v886 = vpop.f32.mrf.mxu0
    %887 = vmatprep.mubr.bf16.mxu0 0
    %888 = vmatmul.mubr.bf16.gmra.mxu0 %v800
    %v889 = vpop.f32.mrf.mxu0
    %v890 = vadd.f32 %v598, %v889
    %v891 = vpop.f32.mrf.mxu0
    %v892 = vpop.f32.mrf.mxu0
    %v893 = vadd.f32 %v601, %v892
    %v894 = vpop.f32.mrf.mxu0
    %895 = vmatprep.mubr.bf16.mxu0 0
    %896 = vmatmul.mubr.bf16.gmra.mxu0 %v803
    %v897 = vpop.f32.mrf.mxu0
    %v898 = vadd.f32 %v606, %v897
    %v899 = vpop.f32.mrf.mxu0
    %v900 = vpop.f32.mrf.mxu0
    %v901 = vadd.f32 %v609, %v900
    %v902 = vpop.f32.mrf.mxu0
    %903 = vmatprep.mubr.bf16.mxu0 0
    %904 = vmatmul.mubr.bf16.gmra.mxu0 %v806
    %v905 = vpop.f32.mrf.mxu0
    %v906 = vadd.f32 %v614, %v905
    %v907 = vpop.f32.mrf.mxu0
    %v908 = vpop.f32.mrf.mxu0
    %v909 = vadd.f32 %v617, %v908
    %v910 = vpop.f32.mrf.mxu0
    %911 = vmatprep.mubr.bf16.mxu0 0
    %912 = vmatmul.mubr.bf16.gmra.mxu0 %v809
    %v913 = vpop.f32.mrf.mxu0
    %v914 = vadd.f32 %v622, %v913
    %v915 = vpop.f32.mrf.mxu0
    %v916 = vpop.f32.mrf.mxu0
    %v917 = vadd.f32 %v625, %v916
    %v918 = vpop.f32.mrf.mxu0
    %919 = vmatprep.mubr.bf16.mxu0 0
    %920 = vmatmul.mubr.bf16.gmra.mxu0 %v812
    %v921 = vpop.f32.mrf.mxu0
    %v922 = vadd.f32 %v630, %v921
    %v923 = vpop.f32.mrf.mxu0
    %v924 = vpop.f32.mrf.mxu0
    %v925 = vadd.f32 %v633, %v924
    %v926 = vpop.f32.mrf.mxu0
    %927 = vmatprep.mubr.bf16.mxu0 0
    %928 = vmatmul.mubr.bf16.gmra.mxu0 %v815
    %v929 = vpop.f32.mrf.mxu0
    %v930 = vadd.f32 %v638, %v929
    %v931 = vpop.f32.mrf.mxu0
    %v932 = vpop.f32.mrf.mxu0
    %v933 = vadd.f32 %v641, %v932
    %v934 = vpop.f32.mrf.mxu0
    %935 = vmatprep.mubr.bf16.mxu0 0
    %936 = vmatmul.mubr.bf16.gmra.mxu0 %v818
    %v937 = vpop.f32.mrf.mxu0
    %v938 = vadd.f32 %v646, %v937
    %v939 = vpop.f32.mrf.mxu0
    %v940 = vpop.f32.mrf.mxu0
    %v941 = vadd.f32 %v649, %v940
    %v942 = vpop.f32.mrf.mxu0
    %943 = vmatprep.mubr.bf16.mxu0 0
    %944 = vmatmul.mubr.bf16.gmra.mxu0 %v821
    %v945 = vpop.f32.mrf.mxu0
    %v946 = vadd.f32 %v654, %v945
    %v947 = vpop.f32.mrf.mxu0
    %v948 = vpop.f32.mrf.mxu0
    %v949 = vadd.f32 %v657, %v948
    %v950 = vpop.f32.mrf.mxu0
    %951 = vmatprep.mubr.bf16.mxu0 0
    %952 = vmatmul.mubr.bf16.gmra.mxu0 %v824
    %v953 = vpop.f32.mrf.mxu0
    %v954 = vadd.f32 %v662, %v953
    %v955 = vpop.f32.mrf.mxu0
    %v956 = vpop.f32.mrf.mxu0
    %v957 = vadd.f32 %v665, %v956
    %v958 = vpop.f32.mrf.mxu0
    %959 = vmatprep.mubr.bf16.mxu0 0
    %960 = vmatmul.mubr.bf16.gmra.mxu0 %v827
    %v961 = vpop.f32.mrf.mxu0
    %v962 = vadd.f32 %v670, %v961
    %v963 = vpop.f32.mrf.mxu0
    %v964 = vpop.f32.mrf.mxu0
    %v965 = vadd.f32 %v673, %v964
    %v966 = vpop.f32.mrf.mxu0
    %967 = vmatprep.mubr.bf16.mxu0 0
    %968 = vmatmul.mubr.bf16.gmra.mxu0 %v830
    %v969 = vpop.f32.mrf.mxu0
    %v970 = vadd.f32 %v678, %v969
    %v971 = vpop.f32.mrf.mxu0
    %v972 = vpop.f32.mrf.mxu0
    %v973 = vadd.f32 %v681, %v972
    %v974 = vpop.f32.mrf.mxu0
    %975 = vmatprep.mubr.bf16.mxu0 0
    %976 = vmatmul.mubr.bf16.gmra.mxu0 %v833
    %v977 = vpop.f32.mrf.mxu0
    %v978 = vadd.f32 %v686, %v977
    %v979 = vpop.f32.mrf.mxu0
    %v980 = vpop.f32.mrf.mxu0
    %v981 = vadd.f32 %v689, %v980
    %v982 = vpop.f32.mrf.mxu0
    %983 = vmatprep.mubr.bf16.mxu0 0
    %984 = vmatmul.mubr.bf16.gmra.mxu0 %v836
    %v985 = vpop.f32.mrf.mxu0
    %v986 = vadd.f32 %v694, %v985
    %v987 = vpop.f32.mrf.mxu0
    %v988 = vpop.f32.mrf.mxu0
    %v989 = vadd.f32 %v697, %v988
    %v990 = vpop.f32.mrf.mxu0
    %991 = vmatprep.mubr.bf16.mxu0 0
    %992 = vmatmul.mubr.bf16.gmra.mxu0 %v839
    %v993 = vpop.f32.mrf.mxu0
    %v994 = vadd.f32 %v702, %v993
    %v995 = vpop.f32.mrf.mxu0
    %v996 = vpop.f32.mrf.mxu0
    %v997 = vadd.f32 %v705, %v996
    %v998 = vpop.f32.mrf.mxu0
    %999 = vmatprep.mubr.bf16.mxu0 0
    %1000 = vmatmul.mubr.bf16.gmra.mxu0 %v842
    %v1001 = vpop.f32.mrf.mxu0
    %v1002 = vadd.f32 %v710, %v1001
    %v1003 = vpop.f32.mrf.mxu0
    %v1004 = vpop.f32.mrf.mxu0
    %v1005 = vadd.f32 %v713, %v1004
    %v1006 = vpop.f32.mrf.mxu0
    %1007 = vdwg.mxu0
    %v1008 = vld [vmem:[%s0] sm:$0xe]
    %v1009 = vld [vmem:[%s0 + $0xc] sm:$0xe]
    %v1010 = vld [vmem:[%s0 + $0x18] sm:$0xe]
    %v1011 = vld [vmem:[%s0 + $0x24] sm:$0xe]
    %v1012 = vld [vmem:[%s0 + $0x30] sm:$0xe]
    %v1013 = vld [vmem:[%s0 + $0x3c] sm:$0xe]
    %v1014 = vld [vmem:[%s0 + $0x48] sm:$0xe]
    %v1015 = vld [vmem:[%s0 + $0x54] sm:$0xe]
    %v1016 = vld [vmem:[%s0 + $0x60] sm:$0xe]
    %v1017 = vld [vmem:[%s0 + $0x6c] sm:$0xe]
    %v1018 = vld [vmem:[%s0 + $0x78] sm:$0xe]
    %v1019 = vld [vmem:[%s0 + $0x84] sm:$0xe]
    %v1020 = vld [vmem:[%s0 + $0x90] sm:$0xe]
    %v1021 = vld [vmem:[%s0 + $0x9c] sm:$0xe]
    %v1022 = vld [vmem:[%s0 + $0xa8] sm:$0xe]
    %v1023 = vld [vmem:[%s0 + $0xb4] sm:$0xe]
    %vm1056 = vcmask 1042432
    %vm1057 = vcmask 1046532
    %vm1058 = vmor %vm1056, %vm1057
    %v1059 = vrot.slane %v1008, 5
    %v1060 = vrot.slane %v1059, 4
    %v1061 = vrot.slane %v17, 5
    %v1062 = vsel %vm1058, %v1060, %v1061
    %v1063 = vrot.slane %v1061, 4
    %v1064 = vrot.slane %v49, 5
    %v1065 = vsel %vm1058, %v1063, %v1064
    %v1066 = vrot.slane %v1009, 5
    %v1067 = vrot.slane %v1066, 4
    %v1068 = vrot.slane %v19, 5
    %v1069 = vsel %vm1058, %v1067, %v1068
    %v1070 = vrot.slane %v1068, 4
    %v1071 = vrot.slane %v50, 5
    %v1072 = vsel %vm1058, %v1070, %v1071
    %v1073 = vrot.slane %v1010, 5
    %v1074 = vrot.slane %v1073, 4
    %v1075 = vrot.slane %v21, 5
    %v1076 = vsel %vm1058, %v1074, %v1075
    %v1077 = vrot.slane %v1075, 4
    %v1078 = vrot.slane %v51, 5
    %v1079 = vsel %vm1058, %v1077, %v1078
    %v1080 = vrot.slane %v1011, 5
    %v1081 = vrot.slane %v1080, 4
    %v1082 = vrot.slane %v23, 5
    %v1083 = vsel %vm1058, %v1081, %v1082
    %v1084 = vrot.slane %v1082, 4
    %v1085 = vrot.slane %v52, 5
    %v1086 = vsel %vm1058, %v1084, %v1085
    %v1087 = vrot.slane %v1012, 5
    %v1088 = vrot.slane %v1087, 4
    %v1089 = vrot.slane %v25, 5
    %v1090 = vsel %vm1058, %v1088, %v1089
    %v1091 = vrot.slane %v1089, 4
    %v1092 = vrot.slane %v53, 5
    %v1093 = vsel %vm1058, %v1091, %v1092
    %v1094 = vrot.slane %v1013, 5
    %v1095 = vrot.slane %v1094, 4
    %v1096 = vrot.slane %v27, 5
    %v1097 = vsel %vm1058, %v1095, %v1096
    %v1098 = vrot.slane %v1096, 4
    %v1099 = vrot.slane %v54, 5
    %v1100 = vsel %vm1058, %v1098, %v1099
    %v1101 = vrot.slane %v1014, 5
    %v1102 = vrot.slane %v1101, 4
    %v1103 = vrot.slane %v29, 5
    %v1104 = vsel %vm1058, %v1102, %v1103
    %v1105 = vrot.slane %v1103, 4
    %v1106 = vrot.slane %v55, 5
    %v1107 = vsel %vm1058, %v1105, %v1106
    %v1108 = vrot.slane %v1015, 5
    %v1109 = vrot.slane %v1108, 4
    %v1110 = vrot.slane %v31, 5
    %v1111 = vsel %vm1058, %v1109, %v1110
    %v1112 = vrot.slane %v1110, 4
    %v1113 = vrot.slane %v56, 5
    %v1114 = vsel %vm1058, %v1112, %v1113
    %v1115 = vrot.slane %v1016, 5
    %v1116 = vrot.slane %v1115, 4
    %v1117 = vrot.slane %v33, 5
    %v1118 = vsel %vm1058, %v1116, %v1117
    %v1119 = vrot.slane %v1117, 4
    %v1120 = vrot.slane %v57, 5
    %v1121 = vsel %vm1058, %v1119, %v1120
    %v1122 = vrot.slane %v1017, 5
    %v1123 = vrot.slane %v1122, 4
    %v1124 = vrot.slane %v35, 5
    %v1125 = vsel %vm1058, %v1123, %v1124
    %v1126 = vrot.slane %v1124, 4
    %v1127 = vrot.slane %v58, 5
    %v1128 = vsel %vm1058, %v1126, %v1127
    %v1129 = vrot.slane %v1018, 5
    %v1130 = vrot.slane %v1129, 4
    %v1131 = vrot.slane %v37, 5
    %v1132 = vsel %vm1058, %v1130, %v1131
    %v1133 = vrot.slane %v1131, 4
    %v1134 = vrot.slane %v59, 5
    %v1135 = vsel %vm1058, %v1133, %v1134
    %v1136 = vrot.slane %v1019, 5
    %v1137 = vrot.slane %v1136, 4
    %v1138 = vrot.slane %v39, 5
    %v1139 = vsel %vm1058, %v1137, %v1138
    %v1140 = vrot.slane %v1138, 4
    %v1141 = vrot.slane %v60, 5
    %v1142 = vsel %vm1058, %v1140, %v1141
    %v1143 = vrot.slane %v1020, 5
    %v1144 = vrot.slane %v1143, 4
    %v1145 = vrot.slane %v41, 5
    %v1146 = vsel %vm1058, %v1144, %v1145
    %v1147 = vrot.slane %v1145, 4
    %v1148 = vrot.slane %v61, 5
    %v1149 = vsel %vm1058, %v1147, %v1148
    %v1150 = vrot.slane %v1021, 5
    %v1151 = vrot.slane %v1150, 4
    %v1152 = vrot.slane %v43, 5
    %v1153 = vsel %vm1058, %v1151, %v1152
    %v1154 = vrot.slane %v1152, 4
    %v1155 = vrot.slane %v62, 5
    %v1156 = vsel %vm1058, %v1154, %v1155
    %v1157 = vrot.slane %v1022, 5
    %v1158 = vrot.slane %v1157, 4
    %v1159 = vrot.slane %v45, 5
    %v1160 = vsel %vm1058, %v1158, %v1159
    %v1161 = vrot.slane %v1159, 4
    %v1162 = vrot.slane %v63, 5
    %v1163 = vsel %vm1058, %v1161, %v1162
    %v1164 = vrot.slane %v1023, 5
    %v1165 = vrot.slane %v1164, 4
    %v1166 = vrot.slane %v47, 5
    %v1167 = vsel %vm1058, %v1165, %v1166
    %v1168 = vrot.slane %v1166, 4
    %v1169 = vrot.slane %v64, 5
    %v1170 = vsel %vm1058, %v1168, %v1169
    %s1171 = scalar_lea.vmem %s1, 8
    %v1172 = vld [vmem:[%s1171] sm:$0xf]
    %v1173 = vunpack.c.l.b16 %v1062
    %v1174 = vunpack.c.l.b16 %v1065
    %v1175 = vunpack.c.l.b16 %v1069
    %v1176 = vunpack.c.l.b16 %v1072
    %v1177 = vunpack.c.l.b16 %v1076
    %v1178 = vunpack.c.l.b16 %v1079
    %v1179 = vunpack.c.l.b16 %v1083
    %v1180 = vunpack.c.l.b16 %v1086
    %v1181 = vunpack.c.l.b16 %v1090
    %v1182 = vunpack.c.l.b16 %v1093
    %v1183 = vunpack.c.l.b16 %v1097
    %v1184 = vunpack.c.l.b16 %v1100
    %v1185 = vunpack.c.l.b16 %v1104
    %v1186 = vunpack.c.l.b16 %v1107
    %v1187 = vunpack.c.l.b16 %v1111
    %v1188 = vunpack.c.l.b16 %v1114
    %v1189 = vunpack.c.l.b16 %v1118
    %v1190 = vunpack.c.l.b16 %v1121
    %v1191 = vunpack.c.l.b16 %v1125
    %v1192 = vunpack.c.l.b16 %v1128
    %v1193 = vunpack.c.l.b16 %v1132
    %v1194 = vunpack.c.l.b16 %v1135
    %v1195 = vunpack.c.l.b16 %v1139
    %v1196 = vunpack.c.l.b16 %v1142
    %v1197 = vunpack.c.l.b16 %v1146
    %v1198 = vunpack.c.l.b16 %v1149
    %v1199 = vunpack.c.l.b16 %v1153
    %v1200 = vunpack.c.l.b16 %v1156
    %v1201 = vunpack.c.l.b16 %v1160
    %v1202 = vunpack.c.l.b16 %v1163
    %v1203 = vunpack.c.l.b16 %v1167
    %v1204 = vunpack.c.l.b16 %v1170
    %v1205 = vpack.c.b16 %v1174, %v1173
    %v1206 = vpack.c.b16 %v1176, %v1175
    %v1207 = vpack.c.b16 %v1178, %v1177
    %v1208 = vpack.c.b16 %v1180, %v1179
    %v1209 = vpack.c.b16 %v1182, %v1181
    %v1210 = vpack.c.b16 %v1184, %v1183
    %v1211 = vpack.c.b16 %v1186, %v1185
    %v1212 = vpack.c.b16 %v1188, %v1187
    %v1213 = vpack.c.b16 %v1190, %v1189
    %v1214 = vpack.c.b16 %v1192, %v1191
    %v1215 = vpack.c.b16 %v1194, %v1193
    %v1216 = vpack.c.b16 %v1196, %v1195
    %v1217 = vpack.c.b16 %v1198, %v1197
    %v1218 = vpack.c.b16 %v1200, %v1199
    %v1219 = vpack.c.b16 %v1202, %v1201
    %v1220 = vpack.c.b16 %v1204, %v1203
    %v1222 = vsel %vm502, %v1205, 0
    %v1225 = vsel %vm502, %v1206, 0
    %v1228 = vsel %vm502, %v1207, 0
    %v1231 = vsel %vm502, %v1208, 0
    %v1234 = vsel %vm502, %v1209, 0
    %v1237 = vsel %vm502, %v1210, 0
    %v1240 = vsel %vm502, %v1211, 0
    %v1243 = vsel %vm502, %v1212, 0
    %v1246 = vsel %vm502, %v1213, 0
    %v1249 = vsel %vm502, %v1214, 0
    %v1252 = vsel %vm502, %v1215, 0
    %v1255 = vsel %vm502, %v1216, 0
    %v1258 = vsel %vm502, %v1217, 0
    %v1261 = vsel %vm502, %v1218, 0
    %v1264 = vsel %vm502, %v1219, 0
    %v1267 = vsel %vm502, %v1220, 0
    %v1270 = vsel %vm551, %v1172, 0
    %1272 = vmatprep.subr.bf16.mxu0 0
    %1273 = vmatpush1.bf16.msra.mxu0 0
    %1274 = vmatprep.subr.bf16.mxu0 0
    %1275 = vmatpush1.bf16.msra.mxu0 0
    %1276 = vmatprep.subr.bf16.mxu0 0
    %1277 = vmatpush1.bf16.msra.mxu0 0
    %1278 = vmatprep.subr.bf16.mxu0 0
    %1279 = vmatpush1.bf16.msra.mxu0 0
    %1280 = vmatprep.subr.bf16.mxu0 0
    %1281 = vmatpush1.bf16.msra.mxu0 0
    %1282 = vmatprep.subr.bf16.mxu0 0
    %1283 = vmatpush1.bf16.msra.mxu0 0
    %1284 = vmatprep.subr.bf16.mxu0 0
    %1285 = vmatpush1.bf16.msra.mxu0 0
    %1286 = vmatprep.subr.bf16.mxu0 0
    %1287 = vmatpush1.bf16.msra.mxu0 %v1270
    %1288 = vmatprep.subr.bf16.mxu0 0
    %1289 = vmatpush2.bf16.msra.mxu0 0
    %1290 = vmatprep.subr.bf16.mxu0 0
    %1291 = vmatpush2.bf16.msra.mxu0 0
    %1292 = vmatprep.subr.bf16.mxu0 0
    %1293 = vmatpush2.bf16.msra.mxu0 0
    %1294 = vmatprep.subr.bf16.mxu0 0
    %1295 = vmatpush2.bf16.msra.mxu0 0
    %1296 = vmatprep.subr.bf16.mxu0 0
    %1297 = vmatpush2.bf16.msra.mxu0 0
    %1298 = vmatprep.subr.bf16.mxu0 0
    %1299 = vmatpush2.bf16.msra.mxu0 0
    %1300 = vmatprep.subr.bf16.mxu0 0
    %1301 = vmatpush2.bf16.msra.mxu0 0
    %1302 = vmatprep.subr.bf16.mxu0 0
    %1303 = vmatpush2.bf16.msra.mxu0 0
    %1304 = vmatprep.mubr.bf16.mxu0 0
    %1305 = vmatmul.mubr.bf16.gmra.mxu0 %v1222
    %v1306 = vpop.f32.mrf.mxu0
    %v1307 = vadd.f32 0.0, %v1306
    %v1308 = vpop.f32.mrf.mxu0
    %v1309 = vpop.f32.mrf.mxu0
    %v1310 = vadd.f32 0.0, %v1309
    %v1311 = vpop.f32.mrf.mxu0
    %1312 = vmatprep.mubr.bf16.mxu0 0
    %1313 = vmatmul.mubr.bf16.gmra.mxu0 %v1225
    %v1314 = vpop.f32.mrf.mxu0
    %v1315 = vadd.f32 0.0, %v1314
    %v1316 = vpop.f32.mrf.mxu0
    %v1317 = vpop.f32.mrf.mxu0
    %v1318 = vadd.f32 0.0, %v1317
    %v1319 = vpop.f32.mrf.mxu0
    %1320 = vmatprep.mubr.bf16.mxu0 0
    %1321 = vmatmul.mubr.bf16.gmra.mxu0 %v1228
    %v1322 = vpop.f32.mrf.mxu0
    %v1323 = vadd.f32 0.0, %v1322
    %v1324 = vpop.f32.mrf.mxu0
    %v1325 = vpop.f32.mrf.mxu0
    %v1326 = vadd.f32 0.0, %v1325
    %v1327 = vpop.f32.mrf.mxu0
    %1328 = vmatprep.mubr.bf16.mxu0 0
    %1329 = vmatmul.mubr.bf16.gmra.mxu0 %v1231
    %v1330 = vpop.f32.mrf.mxu0
    %v1331 = vadd.f32 0.0, %v1330
    %v1332 = vpop.f32.mrf.mxu0
    %v1333 = vpop.f32.mrf.mxu0
    %v1334 = vadd.f32 0.0, %v1333
    %v1335 = vpop.f32.mrf.mxu0
    %1336 = vmatprep.mubr.bf16.mxu0 0
    %1337 = vmatmul.mubr.bf16.gmra.mxu0 %v1234
    %v1338 = vpop.f32.mrf.mxu0
    %v1339 = vadd.f32 0.0, %v1338
    %v1340 = vpop.f32.mrf.mxu0
    %v1341 = vpop.f32.mrf.mxu0
    %v1342 = vadd.f32 0.0, %v1341
    %v1343 = vpop.f32.mrf.mxu0
    %1344 = vmatprep.mubr.bf16.mxu0 0
    %1345 = vmatmul.mubr.bf16.gmra.mxu0 %v1237
    %v1346 = vpop.f32.mrf.mxu0
    %v1347 = vadd.f32 0.0, %v1346
    %v1348 = vpop.f32.mrf.mxu0
    %v1349 = vpop.f32.mrf.mxu0
    %v1350 = vadd.f32 0.0, %v1349
    %v1351 = vpop.f32.mrf.mxu0
    %1352 = vmatprep.mubr.bf16.mxu0 0
    %1353 = vmatmul.mubr.bf16.gmra.mxu0 %v1240
    %v1354 = vpop.f32.mrf.mxu0
    %v1355 = vadd.f32 0.0, %v1354
    %v1356 = vpop.f32.mrf.mxu0
    %v1357 = vpop.f32.mrf.mxu0
    %v1358 = vadd.f32 0.0, %v1357
    %v1359 = vpop.f32.mrf.mxu0
    %1360 = vmatprep.mubr.bf16.mxu0 0
    %1361 = vmatmul.mubr.bf16.gmra.mxu0 %v1243
    %v1362 = vpop.f32.mrf.mxu0
    %v1363 = vadd.f32 0.0, %v1362
    %v1364 = vpop.f32.mrf.mxu0
    %v1365 = vpop.f32.mrf.mxu0
    %v1366 = vadd.f32 0.0, %v1365
    %v1367 = vpop.f32.mrf.mxu0
    %1368 = vmatprep.mubr.bf16.mxu0 0
    %1369 = vmatmul.mubr.bf16.gmra.mxu0 %v1246
    %v1370 = vpop.f32.mrf.mxu0
    %v1371 = vadd.f32 0.0, %v1370
    %v1372 = vpop.f32.mrf.mxu0
    %v1373 = vpop.f32.mrf.mxu0
    %v1374 = vadd.f32 0.0, %v1373
    %v1375 = vpop.f32.mrf.mxu0
    %1376 = vmatprep.mubr.bf16.mxu0 0
    %1377 = vmatmul.mubr.bf16.gmra.mxu0 %v1249
    %v1378 = vpop.f32.mrf.mxu0
    %v1379 = vadd.f32 0.0, %v1378
    %v1380 = vpop.f32.mrf.mxu0
    %v1381 = vpop.f32.mrf.mxu0
    %v1382 = vadd.f32 0.0, %v1381
    %v1383 = vpop.f32.mrf.mxu0
    %1384 = vmatprep.mubr.bf16.mxu0 0
    %1385 = vmatmul.mubr.bf16.gmra.mxu0 %v1252
    %v1386 = vpop.f32.mrf.mxu0
    %v1387 = vadd.f32 0.0, %v1386
    %v1388 = vpop.f32.mrf.mxu0
    %v1389 = vpop.f32.mrf.mxu0
    %v1390 = vadd.f32 0.0, %v1389
    %v1391 = vpop.f32.mrf.mxu0
    %1392 = vmatprep.mubr.bf16.mxu0 0
    %1393 = vmatmul.mubr.bf16.gmra.mxu0 %v1255
    %v1394 = vpop.f32.mrf.mxu0
    %v1395 = vadd.f32 0.0, %v1394
    %v1396 = vpop.f32.mrf.mxu0
    %v1397 = vpop.f32.mrf.mxu0
    %v1398 = vadd.f32 0.0, %v1397
    %v1399 = vpop.f32.mrf.mxu0
    %1400 = vmatprep.mubr.bf16.mxu0 0
    %1401 = vmatmul.mubr.bf16.gmra.mxu0 %v1258
    %v1402 = vpop.f32.mrf.mxu0
    %v1403 = vadd.f32 0.0, %v1402
    %v1404 = vpop.f32.mrf.mxu0
    %v1405 = vpop.f32.mrf.mxu0
    %v1406 = vadd.f32 0.0, %v1405
    %v1407 = vpop.f32.mrf.mxu0
    %1408 = vmatprep.mubr.bf16.mxu0 0
    %1409 = vmatmul.mubr.bf16.gmra.mxu0 %v1261
    %v1410 = vpop.f32.mrf.mxu0
    %v1411 = vadd.f32 0.0, %v1410
    %v1412 = vpop.f32.mrf.mxu0
    %v1413 = vpop.f32.mrf.mxu0
    %v1414 = vadd.f32 0.0, %v1413
    %v1415 = vpop.f32.mrf.mxu0
    %1416 = vmatprep.mubr.bf16.mxu0 0
    %1417 = vmatmul.mubr.bf16.gmra.mxu0 %v1264
    %v1418 = vpop.f32.mrf.mxu0
    %v1419 = vadd.f32 0.0, %v1418
    %v1420 = vpop.f32.mrf.mxu0
    %v1421 = vpop.f32.mrf.mxu0
    %v1422 = vadd.f32 0.0, %v1421
    %v1423 = vpop.f32.mrf.mxu0
    %1424 = vmatprep.mubr.bf16.mxu0 0
    %1425 = vmatmul.mubr.bf16.gmra.mxu0 %v1267
    %v1426 = vpop.f32.mrf.mxu0
    %v1427 = vadd.f32 0.0, %v1426
    %v1428 = vpop.f32.mrf.mxu0
    %v1429 = vpop.f32.mrf.mxu0
    %v1430 = vadd.f32 0.0, %v1429
    %v1431 = vpop.f32.mrf.mxu0
    %1432 = vdwg.mxu0
    %v1433 = vadd.f32 %v882, %v1307
    %v1434 = vadd.f32 %v885, %v1310
    %v1435 = vadd.f32 %v890, %v1315
    %v1436 = vadd.f32 %v893, %v1318
    %v1437 = vadd.f32 %v898, %v1323
    %v1438 = vadd.f32 %v901, %v1326
    %v1439 = vadd.f32 %v906, %v1331
    %v1440 = vadd.f32 %v909, %v1334
    %v1441 = vadd.f32 %v914, %v1339
    %v1442 = vadd.f32 %v917, %v1342
    %v1443 = vadd.f32 %v922, %v1347
    %v1444 = vadd.f32 %v925, %v1350
    %v1445 = vadd.f32 %v930, %v1355
    %v1446 = vadd.f32 %v933, %v1358
    %v1447 = vadd.f32 %v938, %v1363
    %v1448 = vadd.f32 %v941, %v1366
    %v1449 = vadd.f32 %v946, %v1371
    %v1450 = vadd.f32 %v949, %v1374
    %v1451 = vadd.f32 %v954, %v1379
    %v1452 = vadd.f32 %v957, %v1382
    %v1453 = vadd.f32 %v962, %v1387
    %v1454 = vadd.f32 %v965, %v1390
    %v1455 = vadd.f32 %v970, %v1395
    %v1456 = vadd.f32 %v973, %v1398
    %v1457 = vadd.f32 %v978, %v1403
    %v1458 = vadd.f32 %v981, %v1406
    %v1459 = vadd.f32 %v986, %v1411
    %v1460 = vadd.f32 %v989, %v1414
    %v1461 = vadd.f32 %v994, %v1419
    %v1462 = vadd.f32 %v997, %v1422
    %v1463 = vadd.f32 %v1002, %v1427
    %v1464 = vadd.f32 %v1005, %v1430
    %v1465 = vlaneseq
    %v1466 = vshrl.u32 %v1465, 7
    %v1467 = vadd.s32 %v1466, 8
    %vm1468 = vcmp.lt.s32.totalorder %v1466, 14
    %vm1469 = vcmp.lt.s32.totalorder %v1467, 14
    %v1470 = vsel %vm1468, %v1433, -1e+30
    %v1471 = vsel %vm1469, %v1434, -1e+30
    %v1472 = vsel %vm1468, %v1435, -1e+30
    %v1473 = vsel %vm1469, %v1436, -1e+30
    %v1474 = vsel %vm1468, %v1437, -1e+30
    %v1475 = vsel %vm1469, %v1438, -1e+30
    %v1476 = vsel %vm1468, %v1439, -1e+30
    %v1477 = vsel %vm1469, %v1440, -1e+30
    %v1478 = vsel %vm1468, %v1441, -1e+30
    %v1479 = vsel %vm1469, %v1442, -1e+30
    %v1480 = vsel %vm1468, %v1443, -1e+30
    %v1481 = vsel %vm1469, %v1444, -1e+30
    %v1482 = vsel %vm1468, %v1445, -1e+30
    %v1483 = vsel %vm1469, %v1446, -1e+30
    %v1484 = vsel %vm1468, %v1447, -1e+30
    %v1485 = vsel %vm1469, %v1448, -1e+30
    %v1486 = vsel %vm1468, %v1449, -1e+30
    %v1487 = vsel %vm1469, %v1450, -1e+30
    %v1488 = vsel %vm1468, %v1451, -1e+30
    %v1489 = vsel %vm1469, %v1452, -1e+30
    %v1490 = vsel %vm1468, %v1453, -1e+30
    %v1491 = vsel %vm1469, %v1454, -1e+30
    %v1492 = vsel %vm1468, %v1455, -1e+30
    %v1493 = vsel %vm1469, %v1456, -1e+30
    %v1494 = vsel %vm1468, %v1457, -1e+30
    %v1495 = vsel %vm1469, %v1458, -1e+30
    %v1496 = vsel %vm1468, %v1459, -1e+30
    %v1497 = vsel %vm1469, %v1460, -1e+30
    %v1498 = vsel %vm1468, %v1461, -1e+30
    %v1499 = vsel %vm1469, %v1462, -1e+30
    %v1500 = vsel %vm1468, %v1463, -1e+30
    %v1501 = vsel %vm1469, %v1464, -1e+30
    %v1502 = vmax.f32 %v1470, %v1471
    %v1503 = vrot.slane %v1502, 4
    %v1504 = vmax.f32 %v1502, %v1503
    %v1505 = vrot.slane %v1504, 2
    %v1506 = vmax.f32 %v1504, %v1505
    %v1507 = vrot.slane %v1506, 1
    %v1508 = vmax.f32 %v1506, %v1507
    %v1509 = vmax.f32 %v1472, %v1473
    %v1510 = vrot.slane %v1509, 4
    %v1511 = vmax.f32 %v1509, %v1510
    %v1512 = vrot.slane %v1511, 2
    %v1513 = vmax.f32 %v1511, %v1512
    %v1514 = vrot.slane %v1513, 1
    %v1515 = vmax.f32 %v1513, %v1514
    %v1516 = vmax.f32 %v1474, %v1475
    %v1517 = vrot.slane %v1516, 4
    %v1518 = vmax.f32 %v1516, %v1517
    %v1519 = vrot.slane %v1518, 2
    %v1520 = vmax.f32 %v1518, %v1519
    %v1521 = vrot.slane %v1520, 1
    %v1522 = vmax.f32 %v1520, %v1521
    %v1523 = vmax.f32 %v1476, %v1477
    %v1524 = vrot.slane %v1523, 4
    %v1525 = vmax.f32 %v1523, %v1524
    %v1526 = vrot.slane %v1525, 2
    %v1527 = vmax.f32 %v1525, %v1526
    %v1528 = vrot.slane %v1527, 1
    %v1529 = vmax.f32 %v1527, %v1528
    %v1530 = vmax.f32 %v1478, %v1479
    %v1531 = vrot.slane %v1530, 4
    %v1532 = vmax.f32 %v1530, %v1531
    %v1533 = vrot.slane %v1532, 2
    %v1534 = vmax.f32 %v1532, %v1533
    %v1535 = vrot.slane %v1534, 1
    %v1536 = vmax.f32 %v1534, %v1535
    %v1537 = vmax.f32 %v1480, %v1481
    %v1538 = vrot.slane %v1537, 4
    %v1539 = vmax.f32 %v1537, %v1538
    %v1540 = vrot.slane %v1539, 2
    %v1541 = vmax.f32 %v1539, %v1540
    %v1542 = vrot.slane %v1541, 1
    %v1543 = vmax.f32 %v1541, %v1542
    %v1544 = vmax.f32 %v1482, %v1483
    %v1545 = vrot.slane %v1544, 4
    %v1546 = vmax.f32 %v1544, %v1545
    %v1547 = vrot.slane %v1546, 2
    %v1548 = vmax.f32 %v1546, %v1547
    %v1549 = vrot.slane %v1548, 1
    %v1550 = vmax.f32 %v1548, %v1549
    %v1551 = vmax.f32 %v1484, %v1485
    %v1552 = vrot.slane %v1551, 4
    %v1553 = vmax.f32 %v1551, %v1552
    %v1554 = vrot.slane %v1553, 2
    %v1555 = vmax.f32 %v1553, %v1554
    %v1556 = vrot.slane %v1555, 1
    %v1557 = vmax.f32 %v1555, %v1556
    %v1558 = vmax.f32 %v1486, %v1487
    %v1559 = vrot.slane %v1558, 4
    %v1560 = vmax.f32 %v1558, %v1559
    %v1561 = vrot.slane %v1560, 2
    %v1562 = vmax.f32 %v1560, %v1561
    %v1563 = vrot.slane %v1562, 1
    %v1564 = vmax.f32 %v1562, %v1563
    %v1565 = vmax.f32 %v1488, %v1489
    %v1566 = vrot.slane %v1565, 4
    %v1567 = vmax.f32 %v1565, %v1566
    %v1568 = vrot.slane %v1567, 2
    %v1569 = vmax.f32 %v1567, %v1568
    %v1570 = vrot.slane %v1569, 1
    %v1571 = vmax.f32 %v1569, %v1570
    %v1572 = vmax.f32 %v1490, %v1491
    %v1573 = vrot.slane %v1572, 4
    %v1574 = vmax.f32 %v1572, %v1573
    %v1575 = vrot.slane %v1574, 2
    %v1576 = vmax.f32 %v1574, %v1575
    %v1577 = vrot.slane %v1576, 1
    %v1578 = vmax.f32 %v1576, %v1577
    %v1579 = vmax.f32 %v1492, %v1493
    %v1580 = vrot.slane %v1579, 4
    %v1581 = vmax.f32 %v1579, %v1580
    %v1582 = vrot.slane %v1581, 2
    %v1583 = vmax.f32 %v1581, %v1582
    %v1584 = vrot.slane %v1583, 1
    %v1585 = vmax.f32 %v1583, %v1584
    %v1586 = vmax.f32 %v1494, %v1495
    %v1587 = vrot.slane %v1586, 4
    %v1588 = vmax.f32 %v1586, %v1587
    %v1589 = vrot.slane %v1588, 2
    %v1590 = vmax.f32 %v1588, %v1589
    %v1591 = vrot.slane %v1590, 1
    %v1592 = vmax.f32 %v1590, %v1591
    %v1593 = vmax.f32 %v1496, %v1497
    %v1594 = vrot.slane %v1593, 4
    %v1595 = vmax.f32 %v1593, %v1594
    %v1596 = vrot.slane %v1595, 2
    %v1597 = vmax.f32 %v1595, %v1596
    %v1598 = vrot.slane %v1597, 1
    %v1599 = vmax.f32 %v1597, %v1598
    %v1600 = vmax.f32 %v1498, %v1499
    %v1601 = vrot.slane %v1600, 4
    %v1602 = vmax.f32 %v1600, %v1601
    %v1603 = vrot.slane %v1602, 2
    %v1604 = vmax.f32 %v1602, %v1603
    %v1605 = vrot.slane %v1604, 1
    %v1606 = vmax.f32 %v1604, %v1605
    %v1607 = vmax.f32 %v1500, %v1501
    %v1608 = vrot.slane %v1607, 4
    %v1609 = vmax.f32 %v1607, %v1608
    %v1610 = vrot.slane %v1609, 2
    %v1611 = vmax.f32 %v1609, %v1610
    %v1612 = vrot.slane %v1611, 1
    %v1613 = vmax.f32 %v1611, %v1612
    %v1614 = vld [vmem:[%s2] sm:$0x1]
    %v1616 = vlaneseq
    %v1617 = vshrl.u32 %v1616, 7
    %v1618 = vsub.s32 0, %v1617
    %v1619 = vrot.slane %v1614, %v1618
    %v1621 = vadd.f32 %v1508, %v1619
    %v1622 = vadd.f32 %v1515, %v1619
    %v1623 = vadd.f32 %v1522, %v1619
    %v1624 = vadd.f32 %v1529, %v1619
    %v1625 = vadd.f32 %v1536, %v1619
    %v1626 = vadd.f32 %v1543, %v1619
    %v1627 = vadd.f32 %v1550, %v1619
    %v1628 = vadd.f32 %v1557, %v1619
    %v1629 = vadd.f32 %v1564, %v1619
    %v1630 = vadd.f32 %v1571, %v1619
    %v1631 = vadd.f32 %v1578, %v1619
    %v1632 = vadd.f32 %v1585, %v1619
    %v1633 = vadd.f32 %v1592, %v1619
    %v1634 = vadd.f32 %v1599, %v1619
    %v1635 = vadd.f32 %v1606, %v1619
    %v1636 = vadd.f32 %v1613, %v1619
    %v1637 = vmax.f32 %v1621, 0.0
    %v1638 = vmax.f32 %v1622, 0.0
    %v1639 = vmax.f32 %v1623, 0.0
    %v1640 = vmax.f32 %v1624, 0.0
    %v1641 = vmax.f32 %v1625, 0.0
    %v1642 = vmax.f32 %v1626, 0.0
    %v1643 = vmax.f32 %v1627, 0.0
    %v1644 = vmax.f32 %v1628, 0.0
    %v1645 = vmax.f32 %v1629, 0.0
    %v1646 = vmax.f32 %v1630, 0.0
    %v1647 = vmax.f32 %v1631, 0.0
    %v1648 = vmax.f32 %v1632, 0.0
    %v1649 = vmax.f32 %v1633, 0.0
    %v1650 = vmax.f32 %v1634, 0.0
    %v1651 = vmax.f32 %v1635, 0.0
    %v1652 = vmax.f32 %v1636, 0.0
    %v1669 = vrot.slane %v1638, 7
    %vm1670 = vcmask 1041409
    %v1671 = vsel %vm1670, %v1669, %v1637
    %v1672 = vrot.slane %v1639, 6
    %vm1673 = vcmask 1042434
    %v1674 = vsel %vm1673, %v1672, %v1671
    %v1675 = vrot.slane %v1640, 5
    %vm1676 = vcmask 1043459
    %v1677 = vsel %vm1676, %v1675, %v1674
    %v1678 = vrot.slane %v1641, 4
    %vm1679 = vcmask 1044484
    %v1680 = vsel %vm1679, %v1678, %v1677
    %v1681 = vrot.slane %v1642, 3
    %vm1682 = vcmask 1045509
    %v1683 = vsel %vm1682, %v1681, %v1680
    %v1684 = vrot.slane %v1643, 2
    %vm1685 = vcmask 1046534
    %v1686 = vsel %vm1685, %v1684, %v1683
    %v1687 = vrot.slane %v1644, 1
    %vm1688 = vcmask 1047559
    %v1689 = vsel %vm1688, %v1687, %v1686
    %v1690 = vrot.slane %v1646, 7
    %v1691 = vsel %vm1670, %v1690, %v1645
    %v1692 = vrot.slane %v1647, 6
    %v1693 = vsel %vm1673, %v1692, %v1691
    %v1694 = vrot.slane %v1648, 5
    %v1695 = vsel %vm1676, %v1694, %v1693
    %v1696 = vrot.slane %v1649, 4
    %v1697 = vsel %vm1679, %v1696, %v1695
    %v1698 = vrot.slane %v1650, 3
    %v1699 = vsel %vm1682, %v1698, %v1697
    %v1700 = vrot.slane %v1651, 2
    %v1701 = vsel %vm1685, %v1700, %v1699
    %v1702 = vrot.slane %v1652, 1
    %v1703 = vsel %vm1688, %v1702, %v1701
    %1706 = vst [vmem:[#allocation2] sm:$0xff] %v1689
    %1707 = vst [vmem:[#allocation2 + $0x8] sm:$0xff] %v1703
    // Predicated region
    $region14: #{tpu_custom_call.1} parent=1 // pred_check
      _
    $region15: #{tpu_custom_call.1} parent=1 // pred_check_branch
      %1709 = sbr.rel (0) target = $region17
    $region16: #{tpu_custom_call.1} parent=1 // pred_region
      %s1711 = ssub.s32 256, 256
      %1712 = vsyncadd [#allocation3], %s1711
      %s1713 = sshll.u32 [#allocation2], 4
      %s1714 = int_to_ptr.vmem [resolvable:$true] %s1713
      %1719 = dma.vmem_to_hbm [thread:$0]  %s1714, 256, %s3, [#allocation3], 128, 128, 8
    $region17: #{tpu_custom_call.1} parent=1 // pred_fallthru
      _
    // Predicated region
    $region18: #{tpu_custom_call.1} parent=1 // pred_check
      _
    $region19: #{tpu_custom_call.1} parent=1 // pred_check_branch
      %1721 = sbr.rel (0) target = $region21
    $region20: #{tpu_custom_call.1} parent=1 // pred_region
      %1722 = dma.done [#allocation3], 256
    $region21: #{tpu_custom_call.1} parent=1 // pred_fallthru
      _
    %1723 = vsyncpa [#allocation3], 1

// kernel: tpu_custom_call.1
$region0: #{tpu_custom_call.1}
  #allocation0 [shape = 'u32[]', space=smem, size = 0x4, offset = 0x4, fixed_abs, tag = 'smem constant byte address 0x4 - core index']
  #allocation1 [shape = 'u32[144,128]{1,0:T(1,128)}', space=vmem, size = 0x12000, scoped, tag = 'internal scratch']
  %s0 = inlined_call_operand.vmem [shape: bf16[16,24,8], index: 0, kind: input, shape index: {}]
  %s1 = inlined_call_operand.vmem [shape: bf16[3,8,128], index: 1, kind: input, shape index: {}]
  %s2 = inlined_call_operand.vmem [shape: f32[1,128], index: 2, kind: input, shape index: {}]
  %s3 = inlined_call_operand.hbm [shape: f32[16,128], index: 3, kind: output, shape index: {}]
  %s4 = sld [smem:[#allocation0]]
  $region22: #{tpu_custom_call.1} parent=0
    _
  %s6 = ssub.s32 1, %s4
  %s7 = scalar_select 0, %s6, %s4
  $region1: #{tpu_custom_call.1} parent=0
    #allocation2 [shape = 'u8[8192]{0}', space=vmem, size = 0x2000, scoped, tag = 'output window, operand 0, single buffered']
    #allocation3 [shape = 's32[1]{0}', space=sflag, size = 0x4, scoped, tag = 'scoped memory for tpu_custom_call.1']
    %8 = vsyncpa [#allocation3], 0
    // Predicated region
    $region2: #{tpu_custom_call.1} parent=1 // pred_check
      _
    $region3: #{tpu_custom_call.1} parent=1 // pred_check_branch
      %10 = sbr.rel (0) target = $region5
    $region4: #{tpu_custom_call.1} parent=1 // pred_region
      _
    $region5: #{tpu_custom_call.1} parent=1 // pred_fallthru
      _
    // Predicated region
    $region6: #{tpu_custom_call.1} parent=1 // pred_check
      _
    $region7: #{tpu_custom_call.1} parent=1 // pred_check_branch
      %12 = sbr.rel (0) target = $region9
    $region8: #{tpu_custom_call.1} parent=1 // pred_region
      _
    $region9: #{tpu_custom_call.1} parent=1 // pred_fallthru
      _
    // Predicated region
    $region10: #{tpu_custom_call.1} parent=1 // pred_check
      _
    $region11: #{tpu_custom_call.1} parent=1 // pred_check_branch
      %14 = sbr.rel (0) target = $region13
    $region12: #{tpu_custom_call.1} parent=1 // pred_region
      _
    $region13: #{tpu_custom_call.1} parent=1 // pred_fallthru
      _
    %v16 = vld [vmem:[%s0] sm:$0xf]
    %v17 = vld [vmem:[%s0 + $0x4] sm:$0xf]
    %v18 = vld [vmem:[%s0 + $0xc] sm:$0xf]
    %v19 = vld [vmem:[%s0 + $0x10] sm:$0xf]
    %v20 = vld [vmem:[%s0 + $0x18] sm:$0xf]
    %v21 = vld [vmem:[%s0 + $0x1c] sm:$0xf]
    %v22 = vld [vmem:[%s0 + $0x24] sm:$0xf]
    %v23 = vld [vmem:[%s0 + $0x28] sm:$0xf]
    %v24 = vld [vmem:[%s0 + $0x30] sm:$0xf]
    %v25 = vld [vmem:[%s0 + $0x34] sm:$0xf]
    %v26 = vld [vmem:[%s0 + $0x3c] sm:$0xf]
    %v27 = vld [vmem:[%s0 + $0x40] sm:$0xf]
    %v28 = vld [vmem:[%s0 + $0x48] sm:$0xf]
    %v29 = vld [vmem:[%s0 + $0x4c] sm:$0xf]
    %v30 = vld [vmem:[%s0 + $0x54] sm:$0xf]
    %v31 = vld [vmem:[%s0 + $0x58] sm:$0xf]
    %v32 = vld [vmem:[%s0 + $0x60] sm:$0xf]
    %v33 = vld [vmem:[%s0 + $0x64] sm:$0xf]
    %v34 = vld [vmem:[%s0 + $0x6c] sm:$0xf]
    %v35 = vld [vmem:[%s0 + $0x70] sm:$0xf]
    %v36 = vld [vmem:[%s0 + $0x78] sm:$0xf]
    %v37 = vld [vmem:[%s0 + $0x7c] sm:$0xf]
    %v38 = vld [vmem:[%s0 + $0x84] sm:$0xf]
    %v39 = vld [vmem:[%s0 + $0x88] sm:$0xf]
    %v40 = vld [vmem:[%s0 + $0x90] sm:$0xf]
    %v41 = vld [vmem:[%s0 + $0x94] sm:$0xf]
    %v42 = vld [vmem:[%s0 + $0x9c] sm:$0xf]
    %v43 = vld [vmem:[%s0 + $0xa0] sm:$0xf]
    %v44 = vld [vmem:[%s0 + $0xa8] sm:$0xf]
    %v45 = vld [vmem:[%s0 + $0xac] sm:$0xf]
    %v46 = vld [vmem:[%s0 + $0xb4] sm:$0xf]
    %v47 = vld [vmem:[%s0 + $0xb8] sm:$0xf]
    %v48 = vld [vmem:[%s1] sm:$0xf]
    %v49 = vld [vmem:[%s0 + $0x8] sm:$0x1]
    %v50 = vld [vmem:[%s0 + $0x14] sm:$0x1]
    %v51 = vld [vmem:[%s0 + $0x20] sm:$0x1]
    %v52 = vld [vmem:[%s0 + $0x2c] sm:$0x1]
    %v53 = vld [vmem:[%s0 + $0x38] sm:$0x1]
    %v54 = vld [vmem:[%s0 + $0x44] sm:$0x1]
    %v55 = vld [vmem:[%s0 + $0x50] sm:$0x1]
    %v56 = vld [vmem:[%s0 + $0x5c] sm:$0x1]
    %v57 = vld [vmem:[%s0 + $0x68] sm:$0x1]
    %v58 = vld [vmem:[%s0 + $0x74] sm:$0x1]
    %v59 = vld [vmem:[%s0 + $0x80] sm:$0x1]
    %v60 = vld [vmem:[%s0 + $0x8c] sm:$0x1]
    %v61 = vld [vmem:[%s0 + $0x98] sm:$0x1]
    %v62 = vld [vmem:[%s0 + $0xa4] sm:$0x1]
    %v63 = vld [vmem:[%s0 + $0xb0] sm:$0x1]
    %v64 = vld [vmem:[%s0 + $0xbc] sm:$0x1]
    %vm65 = vsmask.f32 3328
    %vm66 = vsmask.f32 7440
    %vm67 = vmor %vm65, %vm66
    %v69 = vshrl.u32 %v16, 16
    %v71 = vrot.slane %v69, 4
    %v72 = vshll.u32 %v16, 16
    %v74 = vrot.slane %v72, 5
    %v75 = vor.u32 %v71, %v74
    %v76 = vrot.slane %v75, 4
    %v78 = vshll.u32 %v17, 16
    %v80 = vrot.slane %v78, 5
    %v81 = vsel %vm67, %v76, %v80
    %v82 = vshrl.u32 %v17, 16
    %v84 = vrot.slane %v82, 4
    %v85 = vor.u32 %v84, %v80
    %v86 = vrot.slane %v85, 4
    %v88 = vshll.u32 %v49, 16
    %v90 = vrot.slane %v88, 5
    %v91 = vsel %vm67, %v86, %v90
    %v93 = vshrl.u32 %v18, 16
    %v95 = vrot.slane %v93, 4
    %v96 = vshll.u32 %v18, 16
    %v98 = vrot.slane %v96, 5
    %v99 = vor.u32 %v95, %v98
    %v100 = vrot.slane %v99, 4
    %v102 = vshll.u32 %v19, 16
    %v104 = vrot.slane %v102, 5
    %v105 = vsel %vm67, %v100, %v104
    %v106 = vshrl.u32 %v19, 16
    %v108 = vrot.slane %v106, 4
    %v109 = vor.u32 %v108, %v104
    %v110 = vrot.slane %v109, 4
    %v112 = vshll.u32 %v50, 16
    %v114 = vrot.slane %v112, 5
    %v115 = vsel %vm67, %v110, %v114
    %v117 = vshrl.u32 %v20, 16
    %v119 = vrot.slane %v117, 4
    %v120 = vshll.u32 %v20, 16
    %v122 = vrot.slane %v120, 5
    %v123 = vor.u32 %v119, %v122
    %v124 = vrot.slane %v123, 4
    %v126 = vshll.u32 %v21, 16
    %v128 = vrot.slane %v126, 5
    %v129 = vsel %vm67, %v124, %v128
    %v130 = vshrl.u32 %v21, 16
    %v132 = vrot.slane %v130, 4
    %v133 = vor.u32 %v132, %v128
    %v134 = vrot.slane %v133, 4
    %v136 = vshll.u32 %v51, 16
    %v138 = vrot.slane %v136, 5
    %v139 = vsel %vm67, %v134, %v138
    %v141 = vshrl.u32 %v22, 16
    %v143 = vrot.slane %v141, 4
    %v144 = vshll.u32 %v22, 16
    %v146 = vrot.slane %v144, 5
    %v147 = vor.u32 %v143, %v146
    %v148 = vrot.slane %v147, 4
    %v150 = vshll.u32 %v23, 16
    %v152 = vrot.slane %v150, 5
    %v153 = vsel %vm67, %v148, %v152
    %v154 = vshrl.u32 %v23, 16
    %v156 = vrot.slane %v154, 4
    %v157 = vor.u32 %v156, %v152
    %v158 = vrot.slane %v157, 4
    %v160 = vshll.u32 %v52, 16
    %v162 = vrot.slane %v160, 5
    %v163 = vsel %vm67, %v158, %v162
    %v165 = vshrl.u32 %v24, 16
    %v167 = vrot.slane %v165, 4
    %v168 = vshll.u32 %v24, 16
    %v170 = vrot.slane %v168, 5
    %v171 = vor.u32 %v167, %v170
    %v172 = vrot.slane %v171, 4
    %v174 = vshll.u32 %v25, 16
    %v176 = vrot.slane %v174, 5
    %v177 = vsel %vm67, %v172, %v176
    %v178 = vshrl.u32 %v25, 16
    %v180 = vrot.slane %v178, 4
    %v181 = vor.u32 %v180, %v176
    %v182 = vrot.slane %v181, 4
    %v184 = vshll.u32 %v53, 16
    %v186 = vrot.slane %v184, 5
    %v187 = vsel %vm67, %v182, %v186
    %v189 = vshrl.u32 %v26, 16
    %v191 = vrot.slane %v189, 4
    %v192 = vshll.u32 %v26, 16
    %v194 = vrot.slane %v192, 5
    %v195 = vor.u32 %v191, %v194
    %v196 = vrot.slane %v195, 4
    %v198 = vshll.u32 %v27, 16
    %v200 = vrot.slane %v198, 5
    %v201 = vsel %vm67, %v196, %v200
    %v202 = vshrl.u32 %v27, 16
    %v204 = vrot.slane %v202, 4
    %v205 = vor.u32 %v204, %v200
    %v206 = vrot.slane %v205, 4
    %v208 = vshll.u32 %v54, 16
    %v210 = vrot.slane %v208, 5
    %v211 = vsel %vm67, %v206, %v210
    %v213 = vshrl.u32 %v28, 16
    %v215 = vrot.slane %v213, 4
    %v216 = vshll.u32 %v28, 16
    %v218 = vrot.slane %v216, 5
    %v219 = vor.u32 %v215, %v218
    %v220 = vrot.slane %v219, 4
    %v222 = vshll.u32 %v29, 16
    %v224 = vrot.slane %v222, 5
    %v225 = vsel %vm67, %v220, %v224
    %v226 = vshrl.u32 %v29, 16
    %v228 = vrot.slane %v226, 4
    %v229 = vor.u32 %v228, %v224
    %v230 = vrot.slane %v229, 4
    %v232 = vshll.u32 %v55, 16
    %v234 = vrot.slane %v232, 5
    %v235 = vsel %vm67, %v230, %v234
    %v237 = vshrl.u32 %v30, 16
    %v239 = vrot.slane %v237, 4
    %v240 = vshll.u32 %v30, 16
    %v242 = vrot.slane %v240, 5
    %v243 = vor.u32 %v239, %v242
    %v244 = vrot.slane %v243, 4
    %v246 = vshll.u32 %v31, 16
    %v248 = vrot.slane %v246, 5
    %v249 = vsel %vm67, %v244, %v248
    %v250 = vshrl.u32 %v31, 16
    %v252 = vrot.slane %v250, 4
    %v253 = vor.u32 %v252, %v248
    %v254 = vrot.slane %v253, 4
    %v256 = vshll.u32 %v56, 16
    %v258 = vrot.slane %v256, 5
    %v259 = vsel %vm67, %v254, %v258
    %v261 = vshrl.u32 %v32, 16
    %v263 = vrot.slane %v261, 4
    %v264 = vshll.u32 %v32, 16
    %v266 = vrot.slane %v264, 5
    %v267 = vor.u32 %v263, %v266
    %v268 = vrot.slane %v267, 4
    %v270 = vshll.u32 %v33, 16
    %v272 = vrot.slane %v270, 5
    %v273 = vsel %vm67, %v268, %v272
    %v274 = vshrl.u32 %v33, 16
    %v276 = vrot.slane %v274, 4
    %v277 = vor.u32 %v276, %v272
    %v278 = vrot.slane %v277, 4
    %v280 = vshll.u32 %v57, 16
    %v282 = vrot.slane %v280, 5
    %v283 = vsel %vm67, %v278, %v282
    %v285 = vshrl.u32 %v34, 16
    %v287 = vrot.slane %v285, 4
    %v288 = vshll.u32 %v34, 16
    %v290 = vrot.slane %v288, 5
    %v291 = vor.u32 %v287, %v290
    %v292 = vrot.slane %v291, 4
    %v294 = vshll.u32 %v35, 16
    %v296 = vrot.slane %v294, 5
    %v297 = vsel %vm67, %v292, %v296
    %v298 = vshrl.u32 %v35, 16
    %v300 = vrot.slane %v298, 4
    %v301 = vor.u32 %v300, %v296
    %v302 = vrot.slane %v301, 4
    %v304 = vshll.u32 %v58, 16
    %v306 = vrot.slane %v304, 5
    %v307 = vsel %vm67, %v302, %v306
    %v309 = vshrl.u32 %v36, 16
    %v311 = vrot.slane %v309, 4
    %v312 = vshll.u32 %v36, 16
    %v314 = vrot.slane %v312, 5
    %v315 = vor.u32 %v311, %v314
    %v316 = vrot.slane %v315, 4
    %v318 = vshll.u32 %v37, 16
    %v320 = vrot.slane %v318, 5
    %v321 = vsel %vm67, %v316, %v320
    %v322 = vshrl.u32 %v37, 16
    %v324 = vrot.slane %v322, 4
    %v325 = vor.u32 %v324, %v320
    %v326 = vrot.slane %v325, 4
    %v328 = vshll.u32 %v59, 16
    %v330 = vrot.slane %v328, 5
    %v331 = vsel %vm67, %v326, %v330
    %v333 = vshrl.u32 %v38, 16
    %v335 = vrot.slane %v333, 4
    %v336 = vshll.u32 %v38, 16
    %v338 = vrot.slane %v336, 5
    %v339 = vor.u32 %v335, %v338
    %v340 = vrot.slane %v339, 4
    %v342 = vshll.u32 %v39, 16
    %v344 = vrot.slane %v342, 5
    %v345 = vsel %vm67, %v340, %v344
    %v346 = vshrl.u32 %v39, 16
    %v348 = vrot.slane %v346, 4
    %v349 = vor.u32 %v348, %v344
    %v350 = vrot.slane %v349, 4
    %v352 = vshll.u32 %v60, 16
    %v354 = vrot.slane %v352, 5
    %v355 = vsel %vm67, %v350, %v354
    %v357 = vshrl.u32 %v40, 16
    %v359 = vrot.slane %v357, 4
    %v360 = vshll.u32 %v40, 16
    %v362 = vrot.slane %v360, 5
    %v363 = vor.u32 %v359, %v362
    %v364 = vrot.slane %v363, 4
    %v366 = vshll.u32 %v41, 16
    %v368 = vrot.slane %v366, 5
    %v369 = vsel %vm67, %v364, %v368
    %v370 = vshrl.u32 %v41, 16
    %v372 = vrot.slane %v370, 4
    %v373 = vor.u32 %v372, %v368
    %v374 = vrot.slane %v373, 4
    %v376 = vshll.u32 %v61, 16
    %v378 = vrot.slane %v376, 5
    %v379 = vsel %vm67, %v374, %v378
    %v381 = vshrl.u32 %v42, 16
    %v383 = vrot.slane %v381, 4
    %v384 = vshll.u32 %v42, 16
    %v386 = vrot.slane %v384, 5
    %v387 = vor.u32 %v383, %v386
    %v388 = vrot.slane %v387, 4
    %v390 = vshll.u32 %v43, 16
    %v392 = vrot.slane %v390, 5
    %v393 = vsel %vm67, %v388, %v392
    %v394 = vshrl.u32 %v43, 16
    %v396 = vrot.slane %v394, 4
    %v397 = vor.u32 %v396, %v392
    %v398 = vrot.slane %v397, 4
    %v400 = vshll.u32 %v62, 16
    %v402 = vrot.slane %v400, 5
    %v403 = vsel %vm67, %v398, %v402
    %v405 = vshrl.u32 %v44, 16
    %v407 = vrot.slane %v405, 4
    %v408 = vshll.u32 %v44, 16
    %v410 = vrot.slane %v408, 5
    %v411 = vor.u32 %v407, %v410
    %v412 = vrot.slane %v411, 4
    %v414 = vshll.u32 %v45, 16
    %v416 = vrot.slane %v414, 5
    %v417 = vsel %vm67, %v412, %v416
    %v418 = vshrl.u32 %v45, 16
    %v420 = vrot.slane %v418, 4
    %v421 = vor.u32 %v420, %v416
    %v422 = vrot.slane %v421, 4
    %v424 = vshll.u32 %v63, 16
    %v426 = vrot.slane %v424, 5
    %v427 = vsel %vm67, %v422, %v426
    %v429 = vshrl.u32 %v46, 16
    %v431 = vrot.slane %v429, 4
    %v432 = vshll.u32 %v46, 16
    %v434 = vrot.slane %v432, 5
    %v435 = vor.u32 %v431, %v434
    %v436 = vrot.slane %v435, 4
    %v438 = vshll.u32 %v47, 16
    %v440 = vrot.slane %v438, 5
    %v441 = vsel %vm67, %v436, %v440
    %v442 = vshrl.u32 %v47, 16
    %v444 = vrot.slane %v442, 4
    %v445 = vor.u32 %v444, %v440
    %v446 = vrot.slane %v445, 4
    %v448 = vshll.u32 %v64, 16
    %v450 = vrot.slane %v448, 5
    %v451 = vsel %vm67, %v446, %v450
    %s452 = scalar_lea.vmem %s1, 4
    %v453 = vld [vmem:[%s452] sm:$0xf]
    %v454 = vunpack.c.l.b16 %v81
    %v455 = vunpack.c.l.b16 %v91
    %v456 = vunpack.c.l.b16 %v105
    %v457 = vunpack.c.l.b16 %v115
    %v458 = vunpack.c.l.b16 %v129
    %v459 = vunpack.c.l.b16 %v139
    %v460 = vunpack.c.l.b16 %v153
    %v461 = vunpack.c.l.b16 %v163
    %v462 = vunpack.c.l.b16 %v177
    %v463 = vunpack.c.l.b16 %v187
    %v464 = vunpack.c.l.b16 %v201
    %v465 = vunpack.c.l.b16 %v211
    %v466 = vunpack.c.l.b16 %v225
    %v467 = vunpack.c.l.b16 %v235
    %v468 = vunpack.c.l.b16 %v249
    %v469 = vunpack.c.l.b16 %v259
    %v470 = vunpack.c.l.b16 %v273
    %v471 = vunpack.c.l.b16 %v283
    %v472 = vunpack.c.l.b16 %v297
    %v473 = vunpack.c.l.b16 %v307
    %v474 = vunpack.c.l.b16 %v321
    %v475 = vunpack.c.l.b16 %v331
    %v476 = vunpack.c.l.b16 %v345
    %v477 = vunpack.c.l.b16 %v355
    %v478 = vunpack.c.l.b16 %v369
    %v479 = vunpack.c.l.b16 %v379
    %v480 = vunpack.c.l.b16 %v393
    %v481 = vunpack.c.l.b16 %v403
    %v482 = vunpack.c.l.b16 %v417
    %v483 = vunpack.c.l.b16 %v427
    %v484 = vunpack.c.l.b16 %v441
    %v485 = vunpack.c.l.b16 %v451
    %v486 = vpack.c.b16 %v455, %v454
    %v487 = vpack.c.b16 %v457, %v456
    %v488 = vpack.c.b16 %v459, %v458
    %v489 = vpack.c.b16 %v461, %v460
    %v490 = vpack.c.b16 %v463, %v462
    %v491 = vpack.c.b16 %v465, %v464
    %v492 = vpack.c.b16 %v467, %v466
    %v493 = vpack.c.b16 %v469, %v468
    %v494 = vpack.c.b16 %v471, %v470
    %v495 = vpack.c.b16 %v473, %v472
    %v496 = vpack.c.b16 %v475, %v474
    %v497 = vpack.c.b16 %v477, %v476
    %v498 = vpack.c.b16 %v479, %v478
    %v499 = vpack.c.b16 %v481, %v480
    %v500 = vpack.c.b16 %v483, %v482
    %v501 = vpack.c.b16 %v485, %v484
    %vm502 = vcmask 64512
    %v504 = vsel %vm502, %v486, 0
    %v507 = vsel %vm502, %v487, 0
    %v510 = vsel %vm502, %v488, 0
    %v513 = vsel %vm502, %v489, 0
    %v516 = vsel %vm502, %v490, 0
    %v519 = vsel %vm502, %v491, 0
    %v522 = vsel %vm502, %v492, 0
    %v525 = vsel %vm502, %v493, 0
    %v528 = vsel %vm502, %v494, 0
    %v531 = vsel %vm502, %v495, 0
    %v534 = vsel %vm502, %v496, 0
    %v537 = vsel %vm502, %v497, 0
    %v540 = vsel %vm502, %v498, 0
    %v543 = vsel %vm502, %v499, 0
    %v546 = vsel %vm502, %v500, 0
    %v549 = vsel %vm502, %v501, 0
    %vm551 = vcmask 1043456
    %v553 = vsel %vm551, %v453, 0
    %555 = vmatprep.subr.bf16.mxu0 0
    %556 = vmatpush1.bf16.msra.mxu0 0
    %557 = vmatprep.subr.bf16.mxu0 0
    %558 = vmatpush1.bf16.msra.mxu0 0
    %559 = vmatprep.subr.bf16.mxu0 0
    %560 = vmatpush1.bf16.msra.mxu0 0
    %561 = vmatprep.subr.bf16.mxu0 0
    %562 = vmatpush1.bf16.msra.mxu0 0
    %563 = vmatprep.subr.bf16.mxu0 0
    %564 = vmatpush1.bf16.msra.mxu0 0
    %565 = vmatprep.subr.bf16.mxu0 0
    %566 = vmatpush1.bf16.msra.mxu0 0
    %567 = vmatprep.subr.bf16.mxu0 0
    %568 = vmatpush1.bf16.msra.mxu0 0
    %569 = vmatprep.subr.bf16.mxu0 0
    %570 = vmatpush1.bf16.msra.mxu0 %v553
    %571 = vmatprep.subr.bf16.mxu0 0
    %572 = vmatpush2.bf16.msra.mxu0 0
    %573 = vmatprep.subr.bf16.mxu0 0
    %574 = vmatpush2.bf16.msra.mxu0 0
    %575 = vmatprep.subr.bf16.mxu0 0
    %576 = vmatpush2.bf16.msra.mxu0 0
    %577 = vmatprep.subr.bf16.mxu0 0
    %578 = vmatpush2.bf16.msra.mxu0 0
    %579 = vmatprep.subr.bf16.mxu0 0
    %580 = vmatpush2.bf16.msra.mxu0 0
    %581 = vmatprep.subr.bf16.mxu0 0
    %582 = vmatpush2.bf16.msra.mxu0 0
    %583 = vmatprep.subr.bf16.mxu0 0
    %584 = vmatpush2.bf16.msra.mxu0 0
    %585 = vmatprep.subr.bf16.mxu0 0
    %586 = vmatpush2.bf16.msra.mxu0 0
    %587 = vmatprep.mubr.bf16.mxu0 0
    %588 = vmatmul.mubr.bf16.gmra.mxu0 %v504
    %v589 = vpop.f32.mrf.mxu0
    %v590 = vadd.f32 0.0, %v589
    %v591 = vpop.f32.mrf.mxu0
    %v592 = vpop.f32.mrf.mxu0
    %v593 = vadd.f32 0.0, %v592
    %v594 = vpop.f32.mrf.mxu0
    %595 = vmatprep.mubr.bf16.mxu0 0
    %596 = vmatmul.mubr.bf16.gmra.mxu0 %v507
    %v597 = vpop.f32.mrf.mxu0
    %v598 = vadd.f32 0.0, %v597
    %v599 = vpop.f32.mrf.mxu0
    %v600 = vpop.f32.mrf.mxu0
    %v601 = vadd.f32 0.0, %v600
    %v602 = vpop.f32.mrf.mxu0
    %603 = vmatprep.mubr.bf16.mxu0 0
    %604 = vmatmul.mubr.bf16.gmra.mxu0 %v510
    %v605 = vpop.f32.mrf.mxu0
    %v606 = vadd.f32 0.0, %v605
    %v607 = vpop.f32.mrf.mxu0
    %v608 = vpop.f32.mrf.mxu0
    %v609 = vadd.f32 0.0, %v608
    %v610 = vpop.f32.mrf.mxu0
    %611 = vmatprep.mubr.bf16.mxu0 0
    %612 = vmatmul.mubr.bf16.gmra.mxu0 %v513
    %v613 = vpop.f32.mrf.mxu0
    %v614 = vadd.f32 0.0, %v613
    %v615 = vpop.f32.mrf.mxu0
    %v616 = vpop.f32.mrf.mxu0
    %v617 = vadd.f32 0.0, %v616
    %v618 = vpop.f32.mrf.mxu0
    %619 = vmatprep.mubr.bf16.mxu0 0
    %620 = vmatmul.mubr.bf16.gmra.mxu0 %v516
    %v621 = vpop.f32.mrf.mxu0
    %v622 = vadd.f32 0.0, %v621
    %v623 = vpop.f32.mrf.mxu0
    %v624 = vpop.f32.mrf.mxu0
    %v625 = vadd.f32 0.0, %v624
    %v626 = vpop.f32.mrf.mxu0
    %627 = vmatprep.mubr.bf16.mxu0 0
    %628 = vmatmul.mubr.bf16.gmra.mxu0 %v519
    %v629 = vpop.f32.mrf.mxu0
    %v630 = vadd.f32 0.0, %v629
    %v631 = vpop.f32.mrf.mxu0
    %v632 = vpop.f32.mrf.mxu0
    %v633 = vadd.f32 0.0, %v632
    %v634 = vpop.f32.mrf.mxu0
    %635 = vmatprep.mubr.bf16.mxu0 0
    %636 = vmatmul.mubr.bf16.gmra.mxu0 %v522
    %v637 = vpop.f32.mrf.mxu0
    %v638 = vadd.f32 0.0, %v637
    %v639 = vpop.f32.mrf.mxu0
    %v640 = vpop.f32.mrf.mxu0
    %v641 = vadd.f32 0.0, %v640
    %v642 = vpop.f32.mrf.mxu0
    %643 = vmatprep.mubr.bf16.mxu0 0
    %644 = vmatmul.mubr.bf16.gmra.mxu0 %v525
    %v645 = vpop.f32.mrf.mxu0
    %v646 = vadd.f32 0.0, %v645
    %v647 = vpop.f32.mrf.mxu0
    %v648 = vpop.f32.mrf.mxu0
    %v649 = vadd.f32 0.0, %v648
    %v650 = vpop.f32.mrf.mxu0
    %651 = vmatprep.mubr.bf16.mxu0 0
    %652 = vmatmul.mubr.bf16.gmra.mxu0 %v528
    %v653 = vpop.f32.mrf.mxu0
    %v654 = vadd.f32 0.0, %v653
    %v655 = vpop.f32.mrf.mxu0
    %v656 = vpop.f32.mrf.mxu0
    %v657 = vadd.f32 0.0, %v656
    %v658 = vpop.f32.mrf.mxu0
    %659 = vmatprep.mubr.bf16.mxu0 0
    %660 = vmatmul.mubr.bf16.gmra.mxu0 %v531
    %v661 = vpop.f32.mrf.mxu0
    %v662 = vadd.f32 0.0, %v661
    %v663 = vpop.f32.mrf.mxu0
    %v664 = vpop.f32.mrf.mxu0
    %v665 = vadd.f32 0.0, %v664
    %v666 = vpop.f32.mrf.mxu0
    %667 = vmatprep.mubr.bf16.mxu0 0
    %668 = vmatmul.mubr.bf16.gmra.mxu0 %v534
    %v669 = vpop.f32.mrf.mxu0
    %v670 = vadd.f32 0.0, %v669
    %v671 = vpop.f32.mrf.mxu0
    %v672 = vpop.f32.mrf.mxu0
    %v673 = vadd.f32 0.0, %v672
    %v674 = vpop.f32.mrf.mxu0
    %675 = vmatprep.mubr.bf16.mxu0 0
    %676 = vmatmul.mubr.bf16.gmra.mxu0 %v537
    %v677 = vpop.f32.mrf.mxu0
    %v678 = vadd.f32 0.0, %v677
    %v679 = vpop.f32.mrf.mxu0
    %v680 = vpop.f32.mrf.mxu0
    %v681 = vadd.f32 0.0, %v680
    %v682 = vpop.f32.mrf.mxu0
    %683 = vmatprep.mubr.bf16.mxu0 0
    %684 = vmatmul.mubr.bf16.gmra.mxu0 %v540
    %v685 = vpop.f32.mrf.mxu0
    %v686 = vadd.f32 0.0, %v685
    %v687 = vpop.f32.mrf.mxu0
    %v688 = vpop.f32.mrf.mxu0
    %v689 = vadd.f32 0.0, %v688
    %v690 = vpop.f32.mrf.mxu0
    %691 = vmatprep.mubr.bf16.mxu0 0
    %692 = vmatmul.mubr.bf16.gmra.mxu0 %v543
    %v693 = vpop.f32.mrf.mxu0
    %v694 = vadd.f32 0.0, %v693
    %v695 = vpop.f32.mrf.mxu0
    %v696 = vpop.f32.mrf.mxu0
    %v697 = vadd.f32 0.0, %v696
    %v698 = vpop.f32.mrf.mxu0
    %699 = vmatprep.mubr.bf16.mxu0 0
    %700 = vmatmul.mubr.bf16.gmra.mxu0 %v546
    %v701 = vpop.f32.mrf.mxu0
    %v702 = vadd.f32 0.0, %v701
    %v703 = vpop.f32.mrf.mxu0
    %v704 = vpop.f32.mrf.mxu0
    %v705 = vadd.f32 0.0, %v704
    %v706 = vpop.f32.mrf.mxu0
    %707 = vmatprep.mubr.bf16.mxu0 0
    %708 = vmatmul.mubr.bf16.gmra.mxu0 %v549
    %v709 = vpop.f32.mrf.mxu0
    %v710 = vadd.f32 0.0, %v709
    %v711 = vpop.f32.mrf.mxu0
    %v712 = vpop.f32.mrf.mxu0
    %v713 = vadd.f32 0.0, %v712
    %v714 = vpop.f32.mrf.mxu0
    %715 = vdwg.mxu0
    %v748 = vunpack.c.l.b16 %v16
    %v749 = vunpack.c.l.b16 %v17
    %v750 = vunpack.c.l.b16 %v18
    %v751 = vunpack.c.l.b16 %v19
    %v752 = vunpack.c.l.b16 %v20
    %v753 = vunpack.c.l.b16 %v21
    %v754 = vunpack.c.l.b16 %v22
    %v755 = vunpack.c.l.b16 %v23
    %v756 = vunpack.c.l.b16 %v24
    %v757 = vunpack.c.l.b16 %v25
    %v758 = vunpack.c.l.b16 %v26
    %v759 = vunpack.c.l.b16 %v27
    %v760 = vunpack.c.l.b16 %v28
    %v761 = vunpack.c.l.b16 %v29
    %v762 = vunpack.c.l.b16 %v30
    %v763 = vunpack.c.l.b16 %v31
    %v764 = vunpack.c.l.b16 %v32
    %v765 = vunpack.c.l.b16 %v33
    %v766 = vunpack.c.l.b16 %v34
    %v767 = vunpack.c.l.b16 %v35
    %v768 = vunpack.c.l.b16 %v36
    %v769 = vunpack.c.l.b16 %v37
    %v770 = vunpack.c.l.b16 %v38
    %v771 = vunpack.c.l.b16 %v39
    %v772 = vunpack.c.l.b16 %v40
    %v773 = vunpack.c.l.b16 %v41
    %v774 = vunpack.c.l.b16 %v42
    %v775 = vunpack.c.l.b16 %v43
    %v776 = vunpack.c.l.b16 %v44
    %v777 = vunpack.c.l.b16 %v45
    %v778 = vunpack.c.l.b16 %v46
    %v779 = vunpack.c.l.b16 %v47
    %v780 = vpack.c.b16 %v749, %v748
    %v781 = vpack.c.b16 %v751, %v750
    %v782 = vpack.c.b16 %v753, %v752
    %v783 = vpack.c.b16 %v755, %v754
    %v784 = vpack.c.b16 %v757, %v756
    %v785 = vpack.c.b16 %v759, %v758
    %v786 = vpack.c.b16 %v761, %v760
    %v787 = vpack.c.b16 %v763, %v762
    %v788 = vpack.c.b16 %v765, %v764
    %v789 = vpack.c.b16 %v767, %v766
    %v790 = vpack.c.b16 %v769, %v768
    %v791 = vpack.c.b16 %v771, %v770
    %v792 = vpack.c.b16 %v773, %v772
    %v793 = vpack.c.b16 %v775, %v774
    %v794 = vpack.c.b16 %v777, %v776
    %v795 = vpack.c.b16 %v779, %v778
    %v797 = vsel %vm502, %v780, 0
    %v800 = vsel %vm502, %v781, 0
    %v803 = vsel %vm502, %v782, 0
    %v806 = vsel %vm502, %v783, 0
    %v809 = vsel %vm502, %v784, 0
    %v812 = vsel %vm502, %v785, 0
    %v815 = vsel %vm502, %v786, 0
    %v818 = vsel %vm502, %v787, 0
    %v821 = vsel %vm502, %v788, 0
    %v824 = vsel %vm502, %v789, 0
    %v827 = vsel %vm502, %v790, 0
    %v830 = vsel %vm502, %v791, 0
    %v833 = vsel %vm502, %v792, 0
    %v836 = vsel %vm502, %v793, 0
    %v839 = vsel %vm502, %v794, 0
    %v842 = vsel %vm502, %v795, 0
    %v845 = vsel %vm551, %v48, 0
    %847 = vmatprep.subr.bf16.mxu0 0
    %848 = vmatpush1.bf16.msra.mxu0 0
    %849 = vmatprep.subr.bf16.mxu0 0
    %850 = vmatpush1.bf16.msra.mxu0 0
    %851 = vmatprep.subr.bf16.mxu0 0
    %852 = vmatpush1.bf16.msra.mxu0 0
    %853 = vmatprep.subr.bf16.mxu0 0
    %854 = vmatpush1.bf16.msra.mxu0 0
    %855 = vmatprep.subr.bf16.mxu0 0
    %856 = vmatpush1.bf16.msra.mxu0 0
    %857 = vmatprep.subr.bf16.mxu0 0
    %858 = vmatpush1.bf16.msra.mxu0 0
    %859 = vmatprep.subr.bf16.mxu0 0
    %860 = vmatpush1.bf16.msra.mxu0 0
    %861 = vmatprep.subr.bf16.mxu0 0
    %862 = vmatpush1.bf16.msra.mxu0 %v845
    %863 = vmatprep.subr.bf16.mxu0 0
    %864 = vmatpush2.bf16.msra.mxu0 0
    %865 = vmatprep.subr.bf16.mxu0 0
    %866 = vmatpush2.bf16.msra.mxu0 0
    %867 = vmatprep.subr.bf16.mxu0 0
    %868 = vmatpush2.bf16.msra.mxu0 0
    %869 = vmatprep.subr.bf16.mxu0 0
    %870 = vmatpush2.bf16.msra.mxu0 0
    %871 = vmatprep.subr.bf16.mxu0 0
    %872 = vmatpush2.bf16.msra.mxu0 0
    %873 = vmatprep.subr.bf16.mxu0 0
    %874 = vmatpush2.bf16.msra.mxu0 0
    %875 = vmatprep.subr.bf16.mxu0 0
    %876 = vmatpush2.bf16.msra.mxu0 0
    %877 = vmatprep.subr.bf16.mxu0 0
    %878 = vmatpush2.bf16.msra.mxu0 0
    %879 = vmatprep.mubr.bf16.mxu0 0
    %880 = vmatmul.mubr.bf16.gmra.mxu0 %v797
    %v881 = vpop.f32.mrf.mxu0
    %v882 = vadd.f32 %v590, %v881
    %v883 = vpop.f32.mrf.mxu0
    %v884 = vpop.f32.mrf.mxu0
    %v885 = vadd.f32 %v593, %v884
    %v886 = vpop.f32.mrf.mxu0
    %887 = vmatprep.mubr.bf16.mxu0 0
    %888 = vmatmul.mubr.bf16.gmra.mxu0 %v800
    %v889 = vpop.f32.mrf.mxu0
    %v890 = vadd.f32 %v598, %v889
    %v891 = vpop.f32.mrf.mxu0
    %v892 = vpop.f32.mrf.mxu0
    %v893 = vadd.f32 %v601, %v892
    %v894 = vpop.f32.mrf.mxu0
    %895 = vmatprep.mubr.bf16.mxu0 0
    %896 = vmatmul.mubr.bf16.gmra.mxu0 %v803
    %v897 = vpop.f32.mrf.mxu0
    %v898 = vadd.f32 %v606, %v897
    %v899 = vpop.f32.mrf.mxu0
    %v900 = vpop.f32.mrf.mxu0
    %v901 = vadd.f32 %v609, %v900
    %v902 = vpop.f32.mrf.mxu0
    %903 = vmatprep.mubr.bf16.mxu0 0
    %904 = vmatmul.mubr.bf16.gmra.mxu0 %v806
    %v905 = vpop.f32.mrf.mxu0
    %v906 = vadd.f32 %v614, %v905
    %v907 = vpop.f32.mrf.mxu0
    %v908 = vpop.f32.mrf.mxu0
    %v909 = vadd.f32 %v617, %v908
    %v910 = vpop.f32.mrf.mxu0
    %911 = vmatprep.mubr.bf16.mxu0 0
    %912 = vmatmul.mubr.bf16.gmra.mxu0 %v809
    %v913 = vpop.f32.mrf.mxu0
    %v914 = vadd.f32 %v622, %v913
    %v915 = vpop.f32.mrf.mxu0
    %v916 = vpop.f32.mrf.mxu0
    %v917 = vadd.f32 %v625, %v916
    %v918 = vpop.f32.mrf.mxu0
    %919 = vmatprep.mubr.bf16.mxu0 0
    %920 = vmatmul.mubr.bf16.gmra.mxu0 %v812
    %v921 = vpop.f32.mrf.mxu0
    %v922 = vadd.f32 %v630, %v921
    %v923 = vpop.f32.mrf.mxu0
    %v924 = vpop.f32.mrf.mxu0
    %v925 = vadd.f32 %v633, %v924
    %v926 = vpop.f32.mrf.mxu0
    %927 = vmatprep.mubr.bf16.mxu0 0
    %928 = vmatmul.mubr.bf16.gmra.mxu0 %v815
    %v929 = vpop.f32.mrf.mxu0
    %v930 = vadd.f32 %v638, %v929
    %v931 = vpop.f32.mrf.mxu0
    %v932 = vpop.f32.mrf.mxu0
    %v933 = vadd.f32 %v641, %v932
    %v934 = vpop.f32.mrf.mxu0
    %935 = vmatprep.mubr.bf16.mxu0 0
    %936 = vmatmul.mubr.bf16.gmra.mxu0 %v818
    %v937 = vpop.f32.mrf.mxu0
    %v938 = vadd.f32 %v646, %v937
    %v939 = vpop.f32.mrf.mxu0
    %v940 = vpop.f32.mrf.mxu0
    %v941 = vadd.f32 %v649, %v940
    %v942 = vpop.f32.mrf.mxu0
    %943 = vmatprep.mubr.bf16.mxu0 0
    %944 = vmatmul.mubr.bf16.gmra.mxu0 %v821
    %v945 = vpop.f32.mrf.mxu0
    %v946 = vadd.f32 %v654, %v945
    %v947 = vpop.f32.mrf.mxu0
    %v948 = vpop.f32.mrf.mxu0
    %v949 = vadd.f32 %v657, %v948
    %v950 = vpop.f32.mrf.mxu0
    %951 = vmatprep.mubr.bf16.mxu0 0
    %952 = vmatmul.mubr.bf16.gmra.mxu0 %v824
    %v953 = vpop.f32.mrf.mxu0
    %v954 = vadd.f32 %v662, %v953
    %v955 = vpop.f32.mrf.mxu0
    %v956 = vpop.f32.mrf.mxu0
    %v957 = vadd.f32 %v665, %v956
    %v958 = vpop.f32.mrf.mxu0
    %959 = vmatprep.mubr.bf16.mxu0 0
    %960 = vmatmul.mubr.bf16.gmra.mxu0 %v827
    %v961 = vpop.f32.mrf.mxu0
    %v962 = vadd.f32 %v670, %v961
    %v963 = vpop.f32.mrf.mxu0
    %v964 = vpop.f32.mrf.mxu0
    %v965 = vadd.f32 %v673, %v964
    %v966 = vpop.f32.mrf.mxu0
    %967 = vmatprep.mubr.bf16.mxu0 0
    %968 = vmatmul.mubr.bf16.gmra.mxu0 %v830
    %v969 = vpop.f32.mrf.mxu0
    %v970 = vadd.f32 %v678, %v969
    %v971 = vpop.f32.mrf.mxu0
    %v972 = vpop.f32.mrf.mxu0
    %v973 = vadd.f32 %v681, %v972
    %v974 = vpop.f32.mrf.mxu0
    %975 = vmatprep.mubr.bf16.mxu0 0
    %976 = vmatmul.mubr.bf16.gmra.mxu0 %v833
    %v977 = vpop.f32.mrf.mxu0
    %v978 = vadd.f32 %v686, %v977
    %v979 = vpop.f32.mrf.mxu0
    %v980 = vpop.f32.mrf.mxu0
    %v981 = vadd.f32 %v689, %v980
    %v982 = vpop.f32.mrf.mxu0
    %983 = vmatprep.mubr.bf16.mxu0 0
    %984 = vmatmul.mubr.bf16.gmra.mxu0 %v836
    %v985 = vpop.f32.mrf.mxu0
    %v986 = vadd.f32 %v694, %v985
    %v987 = vpop.f32.mrf.mxu0
    %v988 = vpop.f32.mrf.mxu0
    %v989 = vadd.f32 %v697, %v988
    %v990 = vpop.f32.mrf.mxu0
    %991 = vmatprep.mubr.bf16.mxu0 0
    %992 = vmatmul.mubr.bf16.gmra.mxu0 %v839
    %v993 = vpop.f32.mrf.mxu0
    %v994 = vadd.f32 %v702, %v993
    %v995 = vpop.f32.mrf.mxu0
    %v996 = vpop.f32.mrf.mxu0
    %v997 = vadd.f32 %v705, %v996
    %v998 = vpop.f32.mrf.mxu0
    %999 = vmatprep.mubr.bf16.mxu0 0
    %1000 = vmatmul.mubr.bf16.gmra.mxu0 %v842
    %v1001 = vpop.f32.mrf.mxu0
    %v1002 = vadd.f32 %v710, %v1001
    %v1003 = vpop.f32.mrf.mxu0
    %v1004 = vpop.f32.mrf.mxu0
    %v1005 = vadd.f32 %v713, %v1004
    %v1006 = vpop.f32.mrf.mxu0
    %1007 = vdwg.mxu0
    %v1008 = vld [vmem:[%s0] sm:$0xe]
    %v1009 = vld [vmem:[%s0 + $0xc] sm:$0xe]
    %v1010 = vld [vmem:[%s0 + $0x18] sm:$0xe]
    %v1011 = vld [vmem:[%s0 + $0x24] sm:$0xe]
    %v1012 = vld [vmem:[%s0 + $0x30] sm:$0xe]
    %v1013 = vld [vmem:[%s0 + $0x3c] sm:$0xe]
    %v1014 = vld [vmem:[%s0 + $0x48] sm:$0xe]
    %v1015 = vld [vmem:[%s0 + $0x54] sm:$0xe]
    %v1016 = vld [vmem:[%s0 + $0x60] sm:$0xe]
    %v1017 = vld [vmem:[%s0 + $0x6c] sm:$0xe]
    %v1018 = vld [vmem:[%s0 + $0x78] sm:$0xe]
    %v1019 = vld [vmem:[%s0 + $0x84] sm:$0xe]
    %v1020 = vld [vmem:[%s0 + $0x90] sm:$0xe]
    %v1021 = vld [vmem:[%s0 + $0x9c] sm:$0xe]
    %v1022 = vld [vmem:[%s0 + $0xa8] sm:$0xe]
    %v1023 = vld [vmem:[%s0 + $0xb4] sm:$0xe]
    %vm1056 = vcmask 1042432
    %vm1057 = vcmask 1046532
    %vm1058 = vmor %vm1056, %vm1057
    %v1059 = vrot.slane %v1008, 5
    %v1060 = vrot.slane %v1059, 4
    %v1061 = vrot.slane %v17, 5
    %v1062 = vsel %vm1058, %v1060, %v1061
    %v1063 = vrot.slane %v1061, 4
    %v1064 = vrot.slane %v49, 5
    %v1065 = vsel %vm1058, %v1063, %v1064
    %v1066 = vrot.slane %v1009, 5
    %v1067 = vrot.slane %v1066, 4
    %v1068 = vrot.slane %v19, 5
    %v1069 = vsel %vm1058, %v1067, %v1068
    %v1070 = vrot.slane %v1068, 4
    %v1071 = vrot.slane %v50, 5
    %v1072 = vsel %vm1058, %v1070, %v1071
    %v1073 = vrot.slane %v1010, 5
    %v1074 = vrot.slane %v1073, 4
    %v1075 = vrot.slane %v21, 5
    %v1076 = vsel %vm1058, %v1074, %v1075
    %v1077 = vrot.slane %v1075, 4
    %v1078 = vrot.slane %v51, 5
    %v1079 = vsel %vm1058, %v1077, %v1078
    %v1080 = vrot.slane %v1011, 5
    %v1081 = vrot.slane %v1080, 4
    %v1082 = vrot.slane %v23, 5
    %v1083 = vsel %vm1058, %v1081, %v1082
    %v1084 = vrot.slane %v1082, 4
    %v1085 = vrot.slane %v52, 5
    %v1086 = vsel %vm1058, %v1084, %v1085
    %v1087 = vrot.slane %v1012, 5
    %v1088 = vrot.slane %v1087, 4
    %v1089 = vrot.slane %v25, 5
    %v1090 = vsel %vm1058, %v1088, %v1089
    %v1091 = vrot.slane %v1089, 4
    %v1092 = vrot.slane %v53, 5
    %v1093 = vsel %vm1058, %v1091, %v1092
    %v1094 = vrot.slane %v1013, 5
    %v1095 = vrot.slane %v1094, 4
    %v1096 = vrot.slane %v27, 5
    %v1097 = vsel %vm1058, %v1095, %v1096
    %v1098 = vrot.slane %v1096, 4
    %v1099 = vrot.slane %v54, 5
    %v1100 = vsel %vm1058, %v1098, %v1099
    %v1101 = vrot.slane %v1014, 5
    %v1102 = vrot.slane %v1101, 4
    %v1103 = vrot.slane %v29, 5
    %v1104 = vsel %vm1058, %v1102, %v1103
    %v1105 = vrot.slane %v1103, 4
    %v1106 = vrot.slane %v55, 5
    %v1107 = vsel %vm1058, %v1105, %v1106
    %v1108 = vrot.slane %v1015, 5
    %v1109 = vrot.slane %v1108, 4
    %v1110 = vrot.slane %v31, 5
    %v1111 = vsel %vm1058, %v1109, %v1110
    %v1112 = vrot.slane %v1110, 4
    %v1113 = vrot.slane %v56, 5
    %v1114 = vsel %vm1058, %v1112, %v1113
    %v1115 = vrot.slane %v1016, 5
    %v1116 = vrot.slane %v1115, 4
    %v1117 = vrot.slane %v33, 5
    %v1118 = vsel %vm1058, %v1116, %v1117
    %v1119 = vrot.slane %v1117, 4
    %v1120 = vrot.slane %v57, 5
    %v1121 = vsel %vm1058, %v1119, %v1120
    %v1122 = vrot.slane %v1017, 5
    %v1123 = vrot.slane %v1122, 4
    %v1124 = vrot.slane %v35, 5
    %v1125 = vsel %vm1058, %v1123, %v1124
    %v1126 = vrot.slane %v1124, 4
    %v1127 = vrot.slane %v58, 5
    %v1128 = vsel %vm1058, %v1126, %v1127
    %v1129 = vrot.slane %v1018, 5
    %v1130 = vrot.slane %v1129, 4
    %v1131 = vrot.slane %v37, 5
    %v1132 = vsel %vm1058, %v1130, %v1131
    %v1133 = vrot.slane %v1131, 4
    %v1134 = vrot.slane %v59, 5
    %v1135 = vsel %vm1058, %v1133, %v1134
    %v1136 = vrot.slane %v1019, 5
    %v1137 = vrot.slane %v1136, 4
    %v1138 = vrot.slane %v39, 5
    %v1139 = vsel %vm1058, %v1137, %v1138
    %v1140 = vrot.slane %v1138, 4
    %v1141 = vrot.slane %v60, 5
    %v1142 = vsel %vm1058, %v1140, %v1141
    %v1143 = vrot.slane %v1020, 5
    %v1144 = vrot.slane %v1143, 4
    %v1145 = vrot.slane %v41, 5
    %v1146 = vsel %vm1058, %v1144, %v1145
    %v1147 = vrot.slane %v1145, 4
    %v1148 = vrot.slane %v61, 5
    %v1149 = vsel %vm1058, %v1147, %v1148
    %v1150 = vrot.slane %v1021, 5
    %v1151 = vrot.slane %v1150, 4
    %v1152 = vrot.slane %v43, 5
    %v1153 = vsel %vm1058, %v1151, %v1152
    %v1154 = vrot.slane %v1152, 4
    %v1155 = vrot.slane %v62, 5
    %v1156 = vsel %vm1058, %v1154, %v1155
    %v1157 = vrot.slane %v1022, 5
    %v1158 = vrot.slane %v1157, 4
    %v1159 = vrot.slane %v45, 5
    %v1160 = vsel %vm1058, %v1158, %v1159
    %v1161 = vrot.slane %v1159, 4
    %v1162 = vrot.slane %v63, 5
    %v1163 = vsel %vm1058, %v1161, %v1162
    %v1164 = vrot.slane %v1023, 5
    %v1165 = vrot.slane %v1164, 4
    %v1166 = vrot.slane %v47, 5
    %v1167 = vsel %vm1058, %v1165, %v1166
    %v1168 = vrot.slane %v1166, 4
    %v1169 = vrot.slane %v64, 5
    %v1170 = vsel %vm1058, %v1168, %v1169
    %s1171 = scalar_lea.vmem %s1, 8
    %v1172 = vld [vmem:[%s1171] sm:$0xf]
    %v1173 = vunpack.c.l.b16 %v1062
    %v1174 = vunpack.c.l.b16 %v1065
    %v1175 = vunpack.c.l.b16 %v1069
    %v1176 = vunpack.c.l.b16 %v1072
    %v1177 = vunpack.c.l.b16 %v1076
    %v1178 = vunpack.c.l.b16 %v1079
    %v1179 = vunpack.c.l.b16 %v1083
    %v1180 = vunpack.c.l.b16 %v1086
    %v1181 = vunpack.c.l.b16 %v1090
    %v1182 = vunpack.c.l.b16 %v1093
    %v1183 = vunpack.c.l.b16 %v1097
    %v1184 = vunpack.c.l.b16 %v1100
    %v1185 = vunpack.c.l.b16 %v1104
    %v1186 = vunpack.c.l.b16 %v1107
    %v1187 = vunpack.c.l.b16 %v1111
    %v1188 = vunpack.c.l.b16 %v1114
    %v1189 = vunpack.c.l.b16 %v1118
    %v1190 = vunpack.c.l.b16 %v1121
    %v1191 = vunpack.c.l.b16 %v1125
    %v1192 = vunpack.c.l.b16 %v1128
    %v1193 = vunpack.c.l.b16 %v1132
    %v1194 = vunpack.c.l.b16 %v1135
    %v1195 = vunpack.c.l.b16 %v1139
    %v1196 = vunpack.c.l.b16 %v1142
    %v1197 = vunpack.c.l.b16 %v1146
    %v1198 = vunpack.c.l.b16 %v1149
    %v1199 = vunpack.c.l.b16 %v1153
    %v1200 = vunpack.c.l.b16 %v1156
    %v1201 = vunpack.c.l.b16 %v1160
    %v1202 = vunpack.c.l.b16 %v1163
    %v1203 = vunpack.c.l.b16 %v1167
    %v1204 = vunpack.c.l.b16 %v1170
    %v1205 = vpack.c.b16 %v1174, %v1173
    %v1206 = vpack.c.b16 %v1176, %v1175
    %v1207 = vpack.c.b16 %v1178, %v1177
    %v1208 = vpack.c.b16 %v1180, %v1179
    %v1209 = vpack.c.b16 %v1182, %v1181
    %v1210 = vpack.c.b16 %v1184, %v1183
    %v1211 = vpack.c.b16 %v1186, %v1185
    %v1212 = vpack.c.b16 %v1188, %v1187
    %v1213 = vpack.c.b16 %v1190, %v1189
    %v1214 = vpack.c.b16 %v1192, %v1191
    %v1215 = vpack.c.b16 %v1194, %v1193
    %v1216 = vpack.c.b16 %v1196, %v1195
    %v1217 = vpack.c.b16 %v1198, %v1197
    %v1218 = vpack.c.b16 %v1200, %v1199
    %v1219 = vpack.c.b16 %v1202, %v1201
    %v1220 = vpack.c.b16 %v1204, %v1203
    %v1222 = vsel %vm502, %v1205, 0
    %v1225 = vsel %vm502, %v1206, 0
    %v1228 = vsel %vm502, %v1207, 0
    %v1231 = vsel %vm502, %v1208, 0
    %v1234 = vsel %vm502, %v1209, 0
    %v1237 = vsel %vm502, %v1210, 0
    %v1240 = vsel %vm502, %v1211, 0
    %v1243 = vsel %vm502, %v1212, 0
    %v1246 = vsel %vm502, %v1213, 0
    %v1249 = vsel %vm502, %v1214, 0
    %v1252 = vsel %vm502, %v1215, 0
    %v1255 = vsel %vm502, %v1216, 0
    %v1258 = vsel %vm502, %v1217, 0
    %v1261 = vsel %vm502, %v1218, 0
    %v1264 = vsel %vm502, %v1219, 0
    %v1267 = vsel %vm502, %v1220, 0
    %v1270 = vsel %vm551, %v1172, 0
    %1272 = vmatprep.subr.bf16.mxu0 0
    %1273 = vmatpush1.bf16.msra.mxu0 0
    %1274 = vmatprep.subr.bf16.mxu0 0
    %1275 = vmatpush1.bf16.msra.mxu0 0
    %1276 = vmatprep.subr.bf16.mxu0 0
    %1277 = vmatpush1.bf16.msra.mxu0 0
    %1278 = vmatprep.subr.bf16.mxu0 0
    %1279 = vmatpush1.bf16.msra.mxu0 0
    %1280 = vmatprep.subr.bf16.mxu0 0
    %1281 = vmatpush1.bf16.msra.mxu0 0
    %1282 = vmatprep.subr.bf16.mxu0 0
    %1283 = vmatpush1.bf16.msra.mxu0 0
    %1284 = vmatprep.subr.bf16.mxu0 0
    %1285 = vmatpush1.bf16.msra.mxu0 0
    %1286 = vmatprep.subr.bf16.mxu0 0
    %1287 = vmatpush1.bf16.msra.mxu0 %v1270
    %1288 = vmatprep.subr.bf16.mxu0 0
    %1289 = vmatpush2.bf16.msra.mxu0 0
    %1290 = vmatprep.subr.bf16.mxu0 0
    %1291 = vmatpush2.bf16.msra.mxu0 0
    %1292 = vmatprep.subr.bf16.mxu0 0
    %1293 = vmatpush2.bf16.msra.mxu0 0
    %1294 = vmatprep.subr.bf16.mxu0 0
    %1295 = vmatpush2.bf16.msra.mxu0 0
    %1296 = vmatprep.subr.bf16.mxu0 0
    %1297 = vmatpush2.bf16.msra.mxu0 0
    %1298 = vmatprep.subr.bf16.mxu0 0
    %1299 = vmatpush2.bf16.msra.mxu0 0
    %1300 = vmatprep.subr.bf16.mxu0 0
    %1301 = vmatpush2.bf16.msra.mxu0 0
    %1302 = vmatprep.subr.bf16.mxu0 0
    %1303 = vmatpush2.bf16.msra.mxu0 0
    %1304 = vmatprep.mubr.bf16.mxu0 0
    %1305 = vmatmul.mubr.bf16.gmra.mxu0 %v1222
    %v1306 = vpop.f32.mrf.mxu0
    %v1307 = vadd.f32 0.0, %v1306
    %v1308 = vpop.f32.mrf.mxu0
    %v1309 = vpop.f32.mrf.mxu0
    %v1310 = vadd.f32 0.0, %v1309
    %v1311 = vpop.f32.mrf.mxu0
    %1312 = vmatprep.mubr.bf16.mxu0 0
    %1313 = vmatmul.mubr.bf16.gmra.mxu0 %v1225
    %v1314 = vpop.f32.mrf.mxu0
    %v1315 = vadd.f32 0.0, %v1314
    %v1316 = vpop.f32.mrf.mxu0
    %v1317 = vpop.f32.mrf.mxu0
    %v1318 = vadd.f32 0.0, %v1317
    %v1319 = vpop.f32.mrf.mxu0
    %1320 = vmatprep.mubr.bf16.mxu0 0
    %1321 = vmatmul.mubr.bf16.gmra.mxu0 %v1228
    %v1322 = vpop.f32.mrf.mxu0
    %v1323 = vadd.f32 0.0, %v1322
    %v1324 = vpop.f32.mrf.mxu0
    %v1325 = vpop.f32.mrf.mxu0
    %v1326 = vadd.f32 0.0, %v1325
    %v1327 = vpop.f32.mrf.mxu0
    %1328 = vmatprep.mubr.bf16.mxu0 0
    %1329 = vmatmul.mubr.bf16.gmra.mxu0 %v1231
    %v1330 = vpop.f32.mrf.mxu0
    %v1331 = vadd.f32 0.0, %v1330
    %v1332 = vpop.f32.mrf.mxu0
    %v1333 = vpop.f32.mrf.mxu0
    %v1334 = vadd.f32 0.0, %v1333
    %v1335 = vpop.f32.mrf.mxu0
    %1336 = vmatprep.mubr.bf16.mxu0 0
    %1337 = vmatmul.mubr.bf16.gmra.mxu0 %v1234
    %v1338 = vpop.f32.mrf.mxu0
    %v1339 = vadd.f32 0.0, %v1338
    %v1340 = vpop.f32.mrf.mxu0
    %v1341 = vpop.f32.mrf.mxu0
    %v1342 = vadd.f32 0.0, %v1341
    %v1343 = vpop.f32.mrf.mxu0
    %1344 = vmatprep.mubr.bf16.mxu0 0
    %1345 = vmatmul.mubr.bf16.gmra.mxu0 %v1237
    %v1346 = vpop.f32.mrf.mxu0
    %v1347 = vadd.f32 0.0, %v1346
    %v1348 = vpop.f32.mrf.mxu0
    %v1349 = vpop.f32.mrf.mxu0
    %v1350 = vadd.f32 0.0, %v1349
    %v1351 = vpop.f32.mrf.mxu0
    %1352 = vmatprep.mubr.bf16.mxu0 0
    %1353 = vmatmul.mubr.bf16.gmra.mxu0 %v1240
    %v1354 = vpop.f32.mrf.mxu0
    %v1355 = vadd.f32 0.0, %v1354
    %v1356 = vpop.f32.mrf.mxu0
    %v1357 = vpop.f32.mrf.mxu0
    %v1358 = vadd.f32 0.0, %v1357
    %v1359 = vpop.f32.mrf.mxu0
    %1360 = vmatprep.mubr.bf16.mxu0 0
    %1361 = vmatmul.mubr.bf16.gmra.mxu0 %v1243
    %v1362 = vpop.f32.mrf.mxu0
    %v1363 = vadd.f32 0.0, %v1362
    %v1364 = vpop.f32.mrf.mxu0
    %v1365 = vpop.f32.mrf.mxu0
    %v1366 = vadd.f32 0.0, %v1365
    %v1367 = vpop.f32.mrf.mxu0
    %1368 = vmatprep.mubr.bf16.mxu0 0
    %1369 = vmatmul.mubr.bf16.gmra.mxu0 %v1246
    %v1370 = vpop.f32.mrf.mxu0
    %v1371 = vadd.f32 0.0, %v1370
    %v1372 = vpop.f32.mrf.mxu0
    %v1373 = vpop.f32.mrf.mxu0
    %v1374 = vadd.f32 0.0, %v1373
    %v1375 = vpop.f32.mrf.mxu0
    %1376 = vmatprep.mubr.bf16.mxu0 0
    %1377 = vmatmul.mubr.bf16.gmra.mxu0 %v1249
    %v1378 = vpop.f32.mrf.mxu0
    %v1379 = vadd.f32 0.0, %v1378
    %v1380 = vpop.f32.mrf.mxu0
    %v1381 = vpop.f32.mrf.mxu0
    %v1382 = vadd.f32 0.0, %v1381
    %v1383 = vpop.f32.mrf.mxu0
    %1384 = vmatprep.mubr.bf16.mxu0 0
    %1385 = vmatmul.mubr.bf16.gmra.mxu0 %v1252
    %v1386 = vpop.f32.mrf.mxu0
    %v1387 = vadd.f32 0.0, %v1386
    %v1388 = vpop.f32.mrf.mxu0
    %v1389 = vpop.f32.mrf.mxu0
    %v1390 = vadd.f32 0.0, %v1389
    %v1391 = vpop.f32.mrf.mxu0
    %1392 = vmatprep.mubr.bf16.mxu0 0
    %1393 = vmatmul.mubr.bf16.gmra.mxu0 %v1255
    %v1394 = vpop.f32.mrf.mxu0
    %v1395 = vadd.f32 0.0, %v1394
    %v1396 = vpop.f32.mrf.mxu0
    %v1397 = vpop.f32.mrf.mxu0
    %v1398 = vadd.f32 0.0, %v1397
    %v1399 = vpop.f32.mrf.mxu0
    %1400 = vmatprep.mubr.bf16.mxu0 0
    %1401 = vmatmul.mubr.bf16.gmra.mxu0 %v1258
    %v1402 = vpop.f32.mrf.mxu0
    %v1403 = vadd.f32 0.0, %v1402
    %v1404 = vpop.f32.mrf.mxu0
    %v1405 = vpop.f32.mrf.mxu0
    %v1406 = vadd.f32 0.0, %v1405
    %v1407 = vpop.f32.mrf.mxu0
    %1408 = vmatprep.mubr.bf16.mxu0 0
    %1409 = vmatmul.mubr.bf16.gmra.mxu0 %v1261
    %v1410 = vpop.f32.mrf.mxu0
    %v1411 = vadd.f32 0.0, %v1410
    %v1412 = vpop.f32.mrf.mxu0
    %v1413 = vpop.f32.mrf.mxu0
    %v1414 = vadd.f32 0.0, %v1413
    %v1415 = vpop.f32.mrf.mxu0
    %1416 = vmatprep.mubr.bf16.mxu0 0
    %1417 = vmatmul.mubr.bf16.gmra.mxu0 %v1264
    %v1418 = vpop.f32.mrf.mxu0
    %v1419 = vadd.f32 0.0, %v1418
    %v1420 = vpop.f32.mrf.mxu0
    %v1421 = vpop.f32.mrf.mxu0
    %v1422 = vadd.f32 0.0, %v1421
    %v1423 = vpop.f32.mrf.mxu0
    %1424 = vmatprep.mubr.bf16.mxu0 0
    %1425 = vmatmul.mubr.bf16.gmra.mxu0 %v1267
    %v1426 = vpop.f32.mrf.mxu0
    %v1427 = vadd.f32 0.0, %v1426
    %v1428 = vpop.f32.mrf.mxu0
    %v1429 = vpop.f32.mrf.mxu0
    %v1430 = vadd.f32 0.0, %v1429
    %v1431 = vpop.f32.mrf.mxu0
    %1432 = vdwg.mxu0
    %v1433 = vadd.f32 %v882, %v1307
    %v1434 = vadd.f32 %v885, %v1310
    %v1435 = vadd.f32 %v890, %v1315
    %v1436 = vadd.f32 %v893, %v1318
    %v1437 = vadd.f32 %v898, %v1323
    %v1438 = vadd.f32 %v901, %v1326
    %v1439 = vadd.f32 %v906, %v1331
    %v1440 = vadd.f32 %v909, %v1334
    %v1441 = vadd.f32 %v914, %v1339
    %v1442 = vadd.f32 %v917, %v1342
    %v1443 = vadd.f32 %v922, %v1347
    %v1444 = vadd.f32 %v925, %v1350
    %v1445 = vadd.f32 %v930, %v1355
    %v1446 = vadd.f32 %v933, %v1358
    %v1447 = vadd.f32 %v938, %v1363
    %v1448 = vadd.f32 %v941, %v1366
    %v1449 = vadd.f32 %v946, %v1371
    %v1450 = vadd.f32 %v949, %v1374
    %v1451 = vadd.f32 %v954, %v1379
    %v1452 = vadd.f32 %v957, %v1382
    %v1453 = vadd.f32 %v962, %v1387
    %v1454 = vadd.f32 %v965, %v1390
    %v1455 = vadd.f32 %v970, %v1395
    %v1456 = vadd.f32 %v973, %v1398
    %v1457 = vadd.f32 %v978, %v1403
    %v1458 = vadd.f32 %v981, %v1406
    %v1459 = vadd.f32 %v986, %v1411
    %v1460 = vadd.f32 %v989, %v1414
    %v1461 = vadd.f32 %v994, %v1419
    %v1462 = vadd.f32 %v997, %v1422
    %v1463 = vadd.f32 %v1002, %v1427
    %v1464 = vadd.f32 %v1005, %v1430
    %v1465 = vlaneseq
    %v1466 = vshrl.u32 %v1465, 7
    %v1467 = vadd.s32 %v1466, 8
    %vm1468 = vcmp.lt.s32.totalorder %v1466, 14
    %vm1469 = vcmp.lt.s32.totalorder %v1467, 14
    %v1470 = vsel %vm1468, %v1433, -1e+30
    %v1471 = vsel %vm1469, %v1434, -1e+30
    %v1472 = vsel %vm1468, %v1435, -1e+30
    %v1473 = vsel %vm1469, %v1436, -1e+30
    %v1474 = vsel %vm1468, %v1437, -1e+30
    %v1475 = vsel %vm1469, %v1438, -1e+30
    %v1476 = vsel %vm1468, %v1439, -1e+30
    %v1477 = vsel %vm1469, %v1440, -1e+30
    %v1478 = vsel %vm1468, %v1441, -1e+30
    %v1479 = vsel %vm1469, %v1442, -1e+30
    %v1480 = vsel %vm1468, %v1443, -1e+30
    %v1481 = vsel %vm1469, %v1444, -1e+30
    %v1482 = vsel %vm1468, %v1445, -1e+30
    %v1483 = vsel %vm1469, %v1446, -1e+30
    %v1484 = vsel %vm1468, %v1447, -1e+30
    %v1485 = vsel %vm1469, %v1448, -1e+30
    %v1486 = vsel %vm1468, %v1449, -1e+30
    %v1487 = vsel %vm1469, %v1450, -1e+30
    %v1488 = vsel %vm1468, %v1451, -1e+30
    %v1489 = vsel %vm1469, %v1452, -1e+30
    %v1490 = vsel %vm1468, %v1453, -1e+30
    %v1491 = vsel %vm1469, %v1454, -1e+30
    %v1492 = vsel %vm1468, %v1455, -1e+30
    %v1493 = vsel %vm1469, %v1456, -1e+30
    %v1494 = vsel %vm1468, %v1457, -1e+30
    %v1495 = vsel %vm1469, %v1458, -1e+30
    %v1496 = vsel %vm1468, %v1459, -1e+30
    %v1497 = vsel %vm1469, %v1460, -1e+30
    %v1498 = vsel %vm1468, %v1461, -1e+30
    %v1499 = vsel %vm1469, %v1462, -1e+30
    %v1500 = vsel %vm1468, %v1463, -1e+30
    %v1501 = vsel %vm1469, %v1464, -1e+30
    %v1502 = vmax.f32 %v1470, %v1471
    %v1503 = vrot.slane %v1502, 4
    %v1504 = vmax.f32 %v1502, %v1503
    %v1505 = vrot.slane %v1504, 2
    %v1506 = vmax.f32 %v1504, %v1505
    %v1507 = vrot.slane %v1506, 1
    %v1508 = vmax.f32 %v1506, %v1507
    %v1509 = vmax.f32 %v1472, %v1473
    %v1510 = vrot.slane %v1509, 4
    %v1511 = vmax.f32 %v1509, %v1510
    %v1512 = vrot.slane %v1511, 2
    %v1513 = vmax.f32 %v1511, %v1512
    %v1514 = vrot.slane %v1513, 1
    %v1515 = vmax.f32 %v1513, %v1514
    %v1516 = vmax.f32 %v1474, %v1475
    %v1517 = vrot.slane %v1516, 4
    %v1518 = vmax.f32 %v1516, %v1517
    %v1519 = vrot.slane %v1518, 2
    %v1520 = vmax.f32 %v1518, %v1519
    %v1521 = vrot.slane %v1520, 1
    %v1522 = vmax.f32 %v1520, %v1521
    %v1523 = vmax.f32 %v1476, %v1477
    %v1524 = vrot.slane %v1523, 4
    %v1525 = vmax.f32 %v1523, %v1524
    %v1526 = vrot.slane %v1525, 2
    %v1527 = vmax.f32 %v1525, %v1526
    %v1528 = vrot.slane %v1527, 1
    %v1529 = vmax.f32 %v1527, %v1528
    %v1530 = vmax.f32 %v1478, %v1479
    %v1531 = vrot.slane %v1530, 4
    %v1532 = vmax.f32 %v1530, %v1531
    %v1533 = vrot.slane %v1532, 2
    %v1534 = vmax.f32 %v1532, %v1533
    %v1535 = vrot.slane %v1534, 1
    %v1536 = vmax.f32 %v1534, %v1535
    %v1537 = vmax.f32 %v1480, %v1481
    %v1538 = vrot.slane %v1537, 4
    %v1539 = vmax.f32 %v1537, %v1538
    %v1540 = vrot.slane %v1539, 2
    %v1541 = vmax.f32 %v1539, %v1540
    %v1542 = vrot.slane %v1541, 1
    %v1543 = vmax.f32 %v1541, %v1542
    %v1544 = vmax.f32 %v1482, %v1483
    %v1545 = vrot.slane %v1544, 4
    %v1546 = vmax.f32 %v1544, %v1545
    %v1547 = vrot.slane %v1546, 2
    %v1548 = vmax.f32 %v1546, %v1547
    %v1549 = vrot.slane %v1548, 1
    %v1550 = vmax.f32 %v1548, %v1549
    %v1551 = vmax.f32 %v1484, %v1485
    %v1552 = vrot.slane %v1551, 4
    %v1553 = vmax.f32 %v1551, %v1552
    %v1554 = vrot.slane %v1553, 2
    %v1555 = vmax.f32 %v1553, %v1554
    %v1556 = vrot.slane %v1555, 1
    %v1557 = vmax.f32 %v1555, %v1556
    %v1558 = vmax.f32 %v1486, %v1487
    %v1559 = vrot.slane %v1558, 4
    %v1560 = vmax.f32 %v1558, %v1559
    %v1561 = vrot.slane %v1560, 2
    %v1562 = vmax.f32 %v1560, %v1561
    %v1563 = vrot.slane %v1562, 1
    %v1564 = vmax.f32 %v1562, %v1563
    %v1565 = vmax.f32 %v1488, %v1489
    %v1566 = vrot.slane %v1565, 4
    %v1567 = vmax.f32 %v1565, %v1566
    %v1568 = vrot.slane %v1567, 2
    %v1569 = vmax.f32 %v1567, %v1568
    %v1570 = vrot.slane %v1569, 1
    %v1571 = vmax.f32 %v1569, %v1570
    %v1572 = vmax.f32 %v1490, %v1491
    %v1573 = vrot.slane %v1572, 4
    %v1574 = vmax.f32 %v1572, %v1573
    %v1575 = vrot.slane %v1574, 2
    %v1576 = vmax.f32 %v1574, %v1575
    %v1577 = vrot.slane %v1576, 1
    %v1578 = vmax.f32 %v1576, %v1577
    %v1579 = vmax.f32 %v1492, %v1493
    %v1580 = vrot.slane %v1579, 4
    %v1581 = vmax.f32 %v1579, %v1580
    %v1582 = vrot.slane %v1581, 2
    %v1583 = vmax.f32 %v1581, %v1582
    %v1584 = vrot.slane %v1583, 1
    %v1585 = vmax.f32 %v1583, %v1584
    %v1586 = vmax.f32 %v1494, %v1495
    %v1587 = vrot.slane %v1586, 4
    %v1588 = vmax.f32 %v1586, %v1587
    %v1589 = vrot.slane %v1588, 2
    %v1590 = vmax.f32 %v1588, %v1589
    %v1591 = vrot.slane %v1590, 1
    %v1592 = vmax.f32 %v1590, %v1591
    %v1593 = vmax.f32 %v1496, %v1497
    %v1594 = vrot.slane %v1593, 4
    %v1595 = vmax.f32 %v1593, %v1594
    %v1596 = vrot.slane %v1595, 2
    %v1597 = vmax.f32 %v1595, %v1596
    %v1598 = vrot.slane %v1597, 1
    %v1599 = vmax.f32 %v1597, %v1598
    %v1600 = vmax.f32 %v1498, %v1499
    %v1601 = vrot.slane %v1600, 4
    %v1602 = vmax.f32 %v1600, %v1601
    %v1603 = vrot.slane %v1602, 2
    %v1604 = vmax.f32 %v1602, %v1603
    %v1605 = vrot.slane %v1604, 1
    %v1606 = vmax.f32 %v1604, %v1605
    %v1607 = vmax.f32 %v1500, %v1501
    %v1608 = vrot.slane %v1607, 4
    %v1609 = vmax.f32 %v1607, %v1608
    %v1610 = vrot.slane %v1609, 2
    %v1611 = vmax.f32 %v1609, %v1610
    %v1612 = vrot.slane %v1611, 1
    %v1613 = vmax.f32 %v1611, %v1612
    %v1614 = vld [vmem:[%s2] sm:$0x1]
    %v1616 = vlaneseq
    %v1617 = vshrl.u32 %v1616, 7
    %v1618 = vsub.s32 0, %v1617
    %v1619 = vrot.slane %v1614, %v1618
    %v1621 = vadd.f32 %v1508, %v1619
    %v1622 = vadd.f32 %v1515, %v1619
    %v1623 = vadd.f32 %v1522, %v1619
    %v1624 = vadd.f32 %v1529, %v1619
    %v1625 = vadd.f32 %v1536, %v1619
    %v1626 = vadd.f32 %v1543, %v1619
    %v1627 = vadd.f32 %v1550, %v1619
    %v1628 = vadd.f32 %v1557, %v1619
    %v1629 = vadd.f32 %v1564, %v1619
    %v1630 = vadd.f32 %v1571, %v1619
    %v1631 = vadd.f32 %v1578, %v1619
    %v1632 = vadd.f32 %v1585, %v1619
    %v1633 = vadd.f32 %v1592, %v1619
    %v1634 = vadd.f32 %v1599, %v1619
    %v1635 = vadd.f32 %v1606, %v1619
    %v1636 = vadd.f32 %v1613, %v1619
    %v1637 = vmax.f32 %v1621, 0.0
    %v1638 = vmax.f32 %v1622, 0.0
    %v1639 = vmax.f32 %v1623, 0.0
    %v1640 = vmax.f32 %v1624, 0.0
    %v1641 = vmax.f32 %v1625, 0.0
    %v1642 = vmax.f32 %v1626, 0.0
    %v1643 = vmax.f32 %v1627, 0.0
    %v1644 = vmax.f32 %v1628, 0.0
    %v1645 = vmax.f32 %v1629, 0.0
    %v1646 = vmax.f32 %v1630, 0.0
    %v1647 = vmax.f32 %v1631, 0.0
    %v1648 = vmax.f32 %v1632, 0.0
    %v1649 = vmax.f32 %v1633, 0.0
    %v1650 = vmax.f32 %v1634, 0.0
    %v1651 = vmax.f32 %v1635, 0.0
    %v1652 = vmax.f32 %v1636, 0.0
    %v1669 = vrot.slane %v1638, 7
    %vm1670 = vcmask 1041409
    %v1671 = vsel %vm1670, %v1669, %v1637
    %v1672 = vrot.slane %v1639, 6
    %vm1673 = vcmask 1042434
    %v1674 = vsel %vm1673, %v1672, %v1671
    %v1675 = vrot.slane %v1640, 5
    %vm1676 = vcmask 1043459
    %v1677 = vsel %vm1676, %v1675, %v1674
    %v1678 = vrot.slane %v1641, 4
    %vm1679 = vcmask 1044484
    %v1680 = vsel %vm1679, %v1678, %v1677
    %v1681 = vrot.slane %v1642, 3
    %vm1682 = vcmask 1045509
    %v1683 = vsel %vm1682, %v1681, %v1680
    %v1684 = vrot.slane %v1643, 2
    %vm1685 = vcmask 1046534
    %v1686 = vsel %vm1685, %v1684, %v1683
    %v1687 = vrot.slane %v1644, 1
    %vm1688 = vcmask 1047559
    %v1689 = vsel %vm1688, %v1687, %v1686
    %v1690 = vrot.slane %v1646, 7
    %v1691 = vsel %vm1670, %v1690, %v1645
    %v1692 = vrot.slane %v1647, 6
    %v1693 = vsel %vm1673, %v1692, %v1691
    %v1694 = vrot.slane %v1648, 5
    %v1695 = vsel %vm1676, %v1694, %v1693
    %v1696 = vrot.slane %v1649, 4
    %v1697 = vsel %vm1679, %v1696, %v1695
    %v1698 = vrot.slane %v1650, 3
    %v1699 = vsel %vm1682, %v1698, %v1697
    %v1700 = vrot.slane %v1651, 2
    %v1701 = vsel %vm1685, %v1700, %v1699
    %v1702 = vrot.slane %v1652, 1
    %v1703 = vsel %vm1688, %v1702, %v1701
    %1706 = vst [vmem:[#allocation2] sm:$0xff] %v1689
    %1707 = vst [vmem:[#allocation2 + $0x8] sm:$0xff] %v1703
    // Predicated region
    $region14: #{tpu_custom_call.1} parent=1 // pred_check
      _
    $region15: #{tpu_custom_call.1} parent=1 // pred_check_branch
      %1709 = sbr.rel (0) target = $region17
    $region16: #{tpu_custom_call.1} parent=1 // pred_region
      %s1711 = ssub.s32 256, 256
      %1712 = vsyncadd [#allocation3], %s1711
      %s1713 = sshll.u32 [#allocation2], 4
      %s1714 = int_to_ptr.vmem [resolvable:$true] %s1713
      %1719 = dma.vmem_to_hbm [thread:$0]  %s1714, 256, %s3, [#allocation3], 128, 128, 8
    $region17: #{tpu_custom_call.1} parent=1 // pred_fallthru
      _
    // Predicated region
    $region18: #{tpu_custom_call.1} parent=1 // pred_check
      _
    $region19: #{tpu_custom_call.1} parent=1 // pred_check_branch
      %1721 = sbr.rel (0) target = $region21
    $region20: #{tpu_custom_call.1} parent=1 // pred_region
      %1722 = dma.done [#allocation3], 256
    $region21: #{tpu_custom_call.1} parent=1 // pred_fallthru
      _
    %1723 = vsyncpa [#allocation3], 1

</llo_original>
